<compile_context>
chip_gen: v5e
topology: v5e:2x2
jax: 0.10.0
libtpu: 0.0.40
codegen_flags: <defaults>
</compile_context>

<pallas_src>
import functools

import jax
import jax.numpy as jnp
from jax.experimental import pallas as pl
from jax.experimental.pallas import tpu as pltpu


def _round_up(v, m):
    return (v + m - 1) // m * m


def resconv_kernel(x_ref, w_ref, o_ref, p_ref, *, tap_offsets, lout,
                   center_off, n_ch, kc):
    # x_ref: (C, Lext)    padded, flattened input slab (flat spatial in lanes)
    # w_ref: (C, KCP)     fused weights: [K^3*C conv taps | bias col | zeros]
    # o_ref: (C, Lout)    output slab in padded-flat spatial coordinates
    # p_ref: (KCP, Lout)  VMEM scratch holding the in-kernel im2col matrix
    x = x_ref[...]

    # Ones row multiplies the bias column of w; zero rows pad to KCP.
    p_ref[kc:kc + 1, :] = jnp.ones((1, lout), jnp.float32)
    kcp = p_ref.shape[0]
    if kcp > kc + 1:
        p_ref[kc + 1:kcp, :] = jnp.zeros((kcp - kc - 1, lout), jnp.float32)

    # K^3 shifted taps: static lane-offset windows of the padded flat slab.
    for t, off in enumerate(tap_offsets):
        p_ref[t * n_ch:(t + 1) * n_ch, :] = x[:, off:off + lout]

    # Single MXU matmul (conv + bias in one contraction), f32 accumulation:
    # (C, KCP) @ (KCP, Lout) -> (C, Lout).
    y = jnp.dot(w_ref[...], p_ref[...], preferred_element_type=jnp.float32)

    # Residual = the un-shifted centre window (== zero-padded input itself;
    # only interior positions are kept by the wrapper).
    resid = x[:, center_off:center_off + lout].astype(jnp.float32)
    o_ref[...] = (jnp.maximum(y, 0.0) + resid).astype(o_ref.dtype)


def resconv_forward(x_ncdhw, weight, bias, padding):
    """ReLU(Conv3d(x, weight, bias, padding)) + x as a Pallas TPU kernel."""
    N, C, D, H, W = x_ncdhw.shape
    K = weight.shape[2]
    assert weight.shape == (C, C, K, K, K)
    # The residual add requires 'same' spatial output shape.
    assert K % 2 == 1 and padding == (K - 1) // 2
    p = padding

    Dp, Hp, Wp = D + 2 * p, H + 2 * p, W + 2 * p
    L = Dp * Hp * Wp                      # padded flat spatial length
    Lout = _round_up(L, 128)              # lane-dense output width
    delta_max = p * (Hp * Wp + Wp + 1)    # max |tap shift| in flat coords
    margin = _round_up(delta_max, 128)    # left margin so all starts >= 0
    Lext = _round_up(margin + delta_max + Lout, 128)

    # Pad once, flatten spatial, embed at `margin` inside a zero slab.
    xp = jnp.pad(x_ncdhw, ((0, 0), (0, 0), (p, p), (p, p), (p, p)))
    xf = xp.reshape(N, C, L)
    xe = jnp.zeros((N, C, Lext), x_ncdhw.dtype)
    xe = xe.at[:, :, margin:margin + L].set(xf)

    # Fused weight matrix: (C_out, K^3*C_in) taps, then a bias column, then
    # zero columns up to a multiple of 128 (matches the scratch rows).
    KC = K ** 3 * C
    KCP = _round_up(KC + 1, 128)
    w2 = weight.reshape(C, C, K ** 3).transpose(0, 2, 1).reshape(C, KC)
    w2 = jnp.concatenate(
        [w2.astype(jnp.float32),
         bias.reshape(C, 1).astype(jnp.float32),
         jnp.zeros((C, KCP - KC - 1), jnp.float32)],
        axis=1)

    # Per-tap lane offsets into the extended slab (row-major kd, kh, kw).
    tap_offsets = []
    for kd in range(K):
        for kh in range(K):
            for kw in range(K):
                tap_offsets.append(
                    margin + (kd - p) * Hp * Wp + (kh - p) * Wp + (kw - p))
    assert min(tap_offsets) >= 0 and max(tap_offsets) + Lout <= Lext

    kernel = functools.partial(
        resconv_kernel, tap_offsets=tuple(tap_offsets), lout=Lout,
        center_off=margin, n_ch=C, kc=KC)

    # TODO(synk): for volumes too large for one VMEM-resident slab per batch,
    # tile the flat spatial axis (with a +/- delta_max halo) as a second
    # parallel grid dimension.
    out_flat = pl.pallas_call(
        kernel,
        out_shape=jax.ShapeDtypeStruct((N, C, Lout), x_ncdhw.dtype),
        grid=(N,),
        in_specs=[
            pl.BlockSpec((None, C, Lext), lambda n: (n, 0, 0)),
            pl.BlockSpec((C, KCP), lambda n: (0, 0)),
        ],
        out_specs=pl.BlockSpec((None, C, Lout), lambda n: (n, 0, 0)),
        scratch_shapes=[pltpu.VMEM((KCP, Lout), jnp.float32)],
        compiler_params=pltpu.CompilerParams(
            dimension_semantics=("parallel",),
            vmem_limit_bytes=32 * 1024 * 1024,
        ),
    )(xe, w2)

    # Un-flatten and crop the conv padding: result is already NCDHW.
    out = out_flat[:, :, :L].reshape(N, C, Dp, Hp, Wp)
    return out[:, :, p:p + D, p:p + H, p:p + W]


def resconv_reference(x_ncdhw, weight, bias, padding):
    """Pure-JAX reference (XLA conv) for validation."""
    y = jax.lax.conv_general_dilated(
        x_ncdhw,
        weight,
        window_strides=(1, 1, 1),
        padding=[(padding, padding)] * 3,
        dimension_numbers=("NCDHW", "OIDHW", "NCDHW"),
    )
    y = y + bias.reshape(1, -1, 1, 1, 1)
    return jnp.maximum(y, 0.0) + x_ncdhw


if __name__ == "__main__":
    # ResConv(features=4, kernel_size=3, padding=1)
    features, kernel_size, padding = 4, 3, 1
    N, D, H, W = 2, 8, 8, 8

    key = jax.random.PRNGKey(0)
    kx, kwt, kb = jax.random.split(key, 3)
    x = jax.random.normal(kx, (N, features, D, H, W), dtype=jnp.float32)
    fan_in = features * kernel_size ** 3
    weight = jax.random.normal(
        kwt, (features, features, kernel_size, kernel_size, kernel_size),
        dtype=jnp.float32,
    ) * (1.0 / jnp.sqrt(fan_in))
    bias = jax.random.normal(kb, (features,), dtype=jnp.float32) * 0.1

    out = jax.block_until_ready(resconv_forward(x, weight, bias, padding))
    ref = jax.block_until_ready(resconv_reference(x, weight, bias, padding))

    assert out.shape == x.shape and out.dtype == x.dtype
    err = float(jnp.max(jnp.abs(out - ref)))
    assert err < 1e-4, f"mismatch vs reference conv: {err}"
    print("KERNEL_OK")
</pallas_src>

<mosaic_0001>
module attributes {stable_mosaic.version = 11 : i64} {
  func.func @resconv_kernel(%arg0: i32, %arg1: memref<1x4x1280xf32, #tpu.memory_space<vmem>>, %arg2: memref<4x128xf32, #tpu.memory_space<vmem>>, %arg3: memref<1x4x1024xf32, #tpu.memory_space<vmem>>, %arg4: memref<128x1024xf32, #tpu.memory_space<vmem>>) attributes {dimension_semantics = [#tpu.dimension_semantics<parallel>], iteration_bounds = array<i64: 2>, scalar_prefetch = 0 : i64, scratch_operands = 1 : i64, tpu.core_type = #tpu.core_type<tc>, window_params = [{transform_indices = @transform_0, window_bounds = array<i64: 1, 4, 1280>}, {pipeline_mode = #tpu.pipeline_mode<synchronous>, transform_indices = @transform_1, window_bounds = array<i64: 4, 128>}, {transform_indices = @transform_2, window_bounds = array<i64: 1, 4, 1024>}]} {
    %c0 = arith.constant 0 : index
    %c0_0 = arith.constant 0 : index
    %c0_1 = arith.constant 0 : index
    %0 = vector.load %arg1[%c0, %c0_0, %c0_1] : memref<1x4x1280xf32, #tpu.memory_space<vmem>>, vector<1x4x1280xf32>
    %1 = vector.shape_cast %0 : vector<1x4x1280xf32> to vector<4x1280xf32>
    %cst = arith.constant 1.000000e+00 : f32
    %2 = vector.broadcast %cst : f32 to vector<1x1024xf32>
    %c108 = arith.constant 108 : index
    %c0_2 = arith.constant 0 : index
    %3 = vector.load %arg4[%c108, %c0_2] : memref<128x1024xf32, #tpu.memory_space<vmem>>, vector<1x1024xf32>
    tpu.vector_store %arg4[%c108, %c0_2], %2 {strides = array<i32>} : memref<128x1024xf32, #tpu.memory_space<vmem>>, vector<1x1024xf32>,
    %cst_3 = arith.constant 0.000000e+00 : f32
    %4 = vector.broadcast %cst_3 : f32 to vector<19x1024xf32>
    %c109 = arith.constant 109 : index
    %c0_4 = arith.constant 0 : index
    %5 = vector.load %arg4[%c109, %c0_4] : memref<128x1024xf32, #tpu.memory_space<vmem>>, vector<19x1024xf32>
    tpu.vector_store %arg4[%c109, %c0_4], %4 {strides = array<i32>} : memref<128x1024xf32, #tpu.memory_space<vmem>>, vector<19x1024xf32>,
    %6 = vector.extract_strided_slice %1 {offsets = [0, 17], sizes = [4, 1024], strides = [1, 1]} : vector<4x1280xf32> to vector<4x1024xf32>
    %c0_5 = arith.constant 0 : index
    %c0_6 = arith.constant 0 : index
    %7 = vector.load %arg4[%c0_5, %c0_6] : memref<128x1024xf32, #tpu.memory_space<vmem>>, vector<4x1024xf32>
    tpu.vector_store %arg4[%c0_5, %c0_6], %6 {strides = array<i32>} : memref<128x1024xf32, #tpu.memory_space<vmem>>, vector<4x1024xf32>,
    %8 = vector.extract_strided_slice %1 {offsets = [0, 18], sizes = [4, 1024], strides = [1, 1]} : vector<4x1280xf32> to vector<4x1024xf32>
    %c4 = arith.constant 4 : index
    %c0_7 = arith.constant 0 : index
    %9 = vector.load %arg4[%c4, %c0_7] : memref<128x1024xf32, #tpu.memory_space<vmem>>, vector<4x1024xf32>
    tpu.vector_store %arg4[%c4, %c0_7], %8 {strides = array<i32>} : memref<128x1024xf32, #tpu.memory_space<vmem>>, vector<4x1024xf32>,
    %10 = vector.extract_strided_slice %1 {offsets = [0, 19], sizes = [4, 1024], strides = [1, 1]} : vector<4x1280xf32> to vector<4x1024xf32>
    %c8 = arith.constant 8 : index
    %c0_8 = arith.constant 0 : index
    %11 = vector.load %arg4[%c8, %c0_8] : memref<128x1024xf32, #tpu.memory_space<vmem>>, vector<4x1024xf32>
    tpu.vector_store %arg4[%c8, %c0_8], %10 {strides = array<i32>} : memref<128x1024xf32, #tpu.memory_space<vmem>>, vector<4x1024xf32>,
    %12 = vector.extract_strided_slice %1 {offsets = [0, 27], sizes = [4, 1024], strides = [1, 1]} : vector<4x1280xf32> to vector<4x1024xf32>
    %c12 = arith.constant 12 : index
    %c0_9 = arith.constant 0 : index
    %13 = vector.load %arg4[%c12, %c0_9] : memref<128x1024xf32, #tpu.memory_space<vmem>>, vector<4x1024xf32>
    tpu.vector_store %arg4[%c12, %c0_9], %12 {strides = array<i32>} : memref<128x1024xf32, #tpu.memory_space<vmem>>, vector<4x1024xf32>,
    %14 = vector.extract_strided_slice %1 {offsets = [0, 28], sizes = [4, 1024], strides = [1, 1]} : vector<4x1280xf32> to vector<4x1024xf32>
    %c16 = arith.constant 16 : index
    %c0_10 = arith.constant 0 : index
    %15 = vector.load %arg4[%c16, %c0_10] : memref<128x1024xf32, #tpu.memory_space<vmem>>, vector<4x1024xf32>
    tpu.vector_store %arg4[%c16, %c0_10], %14 {strides = array<i32>} : memref<128x1024xf32, #tpu.memory_space<vmem>>, vector<4x1024xf32>,
    %16 = vector.extract_strided_slice %1 {offsets = [0, 29], sizes = [4, 1024], strides = [1, 1]} : vector<4x1280xf32> to vector<4x1024xf32>
    %c20 = arith.constant 20 : index
    %c0_11 = arith.constant 0 : index
    %17 = vector.load %arg4[%c20, %c0_11] : memref<128x1024xf32, #tpu.memory_space<vmem>>, vector<4x1024xf32>
    tpu.vector_store %arg4[%c20, %c0_11], %16 {strides = array<i32>} : memref<128x1024xf32, #tpu.memory_space<vmem>>, vector<4x1024xf32>,
    %18 = vector.extract_strided_slice %1 {offsets = [0, 37], sizes = [4, 1024], strides = [1, 1]} : vector<4x1280xf32> to vector<4x1024xf32>
    %c24 = arith.constant 24 : index
    %c0_12 = arith.constant 0 : index
    %19 = vector.load %arg4[%c24, %c0_12] : memref<128x1024xf32, #tpu.memory_space<vmem>>, vector<4x1024xf32>
    tpu.vector_store %arg4[%c24, %c0_12], %18 {strides = array<i32>} : memref<128x1024xf32, #tpu.memory_space<vmem>>, vector<4x1024xf32>,
    %20 = vector.extract_strided_slice %1 {offsets = [0, 38], sizes = [4, 1024], strides = [1, 1]} : vector<4x1280xf32> to vector<4x1024xf32>
    %c28 = arith.constant 28 : index
    %c0_13 = arith.constant 0 : index
    %21 = vector.load %arg4[%c28, %c0_13] : memref<128x1024xf32, #tpu.memory_space<vmem>>, vector<4x1024xf32>
    tpu.vector_store %arg4[%c28, %c0_13], %20 {strides = array<i32>} : memref<128x1024xf32, #tpu.memory_space<vmem>>, vector<4x1024xf32>,
    %22 = vector.extract_strided_slice %1 {offsets = [0, 39], sizes = [4, 1024], strides = [1, 1]} : vector<4x1280xf32> to vector<4x1024xf32>
    %c32 = arith.constant 32 : index
    %c0_14 = arith.constant 0 : index
    %23 = vector.load %arg4[%c32, %c0_14] : memref<128x1024xf32, #tpu.memory_space<vmem>>, vector<4x1024xf32>
    tpu.vector_store %arg4[%c32, %c0_14], %22 {strides = array<i32>} : memref<128x1024xf32, #tpu.memory_space<vmem>>, vector<4x1024xf32>,
    %24 = vector.extract_strided_slice %1 {offsets = [0, 117], sizes = [4, 1024], strides = [1, 1]} : vector<4x1280xf32> to vector<4x1024xf32>
    %c36 = arith.constant 36 : index
    %c0_15 = arith.constant 0 : index
    %25 = vector.load %arg4[%c36, %c0_15] : memref<128x1024xf32, #tpu.memory_space<vmem>>, vector<4x1024xf32>
    tpu.vector_store %arg4[%c36, %c0_15], %24 {strides = array<i32>} : memref<128x1024xf32, #tpu.memory_space<vmem>>, vector<4x1024xf32>,
    %26 = vector.extract_strided_slice %1 {offsets = [0, 118], sizes = [4, 1024], strides = [1, 1]} : vector<4x1280xf32> to vector<4x1024xf32>
    %c40 = arith.constant 40 : index
    %c0_16 = arith.constant 0 : index
    %27 = vector.load %arg4[%c40, %c0_16] : memref<128x1024xf32, #tpu.memory_space<vmem>>, vector<4x1024xf32>
    tpu.vector_store %arg4[%c40, %c0_16], %26 {strides = array<i32>} : memref<128x1024xf32, #tpu.memory_space<vmem>>, vector<4x1024xf32>,
    %28 = vector.extract_strided_slice %1 {offsets = [0, 119], sizes = [4, 1024], strides = [1, 1]} : vector<4x1280xf32> to vector<4x1024xf32>
    %c44 = arith.constant 44 : index
    %c0_17 = arith.constant 0 : index
    %29 = vector.load %arg4[%c44, %c0_17] : memref<128x1024xf32, #tpu.memory_space<vmem>>, vector<4x1024xf32>
    tpu.vector_store %arg4[%c44, %c0_17], %28 {strides = array<i32>} : memref<128x1024xf32, #tpu.memory_space<vmem>>, vector<4x1024xf32>,
    %30 = vector.extract_strided_slice %1 {offsets = [0, 127], sizes = [4, 1024], strides = [1, 1]} : vector<4x1280xf32> to vector<4x1024xf32>
    %c48 = arith.constant 48 : index
    %c0_18 = arith.constant 0 : index
    %31 = vector.load %arg4[%c48, %c0_18] : memref<128x1024xf32, #tpu.memory_space<vmem>>, vector<4x1024xf32>
    tpu.vector_store %arg4[%c48, %c0_18], %30 {strides = array<i32>} : memref<128x1024xf32, #tpu.memory_space<vmem>>, vector<4x1024xf32>,
    %32 = vector.extract_strided_slice %1 {offsets = [0, 128], sizes = [4, 1024], strides = [1, 1]} : vector<4x1280xf32> to vector<4x1024xf32>
    %c52 = arith.constant 52 : index
    %c0_19 = arith.constant 0 : index
    %33 = vector.load %arg4[%c52, %c0_19] : memref<128x1024xf32, #tpu.memory_space<vmem>>, vector<4x1024xf32>
    tpu.vector_store %arg4[%c52, %c0_19], %32 {strides = array<i32>} : memref<128x1024xf32, #tpu.memory_space<vmem>>, vector<4x1024xf32>,
    %34 = vector.extract_strided_slice %1 {offsets = [0, 129], sizes = [4, 1024], strides = [1, 1]} : vector<4x1280xf32> to vector<4x1024xf32>
    %c56 = arith.constant 56 : index
    %c0_20 = arith.constant 0 : index
    %35 = vector.load %arg4[%c56, %c0_20] : memref<128x1024xf32, #tpu.memory_space<vmem>>, vector<4x1024xf32>
    tpu.vector_store %arg4[%c56, %c0_20], %34 {strides = array<i32>} : memref<128x1024xf32, #tpu.memory_space<vmem>>, vector<4x1024xf32>,
    %36 = vector.extract_strided_slice %1 {offsets = [0, 137], sizes = [4, 1024], strides = [1, 1]} : vector<4x1280xf32> to vector<4x1024xf32>
    %c60 = arith.constant 60 : index
    %c0_21 = arith.constant 0 : index
    %37 = vector.load %arg4[%c60, %c0_21] : memref<128x1024xf32, #tpu.memory_space<vmem>>, vector<4x1024xf32>
    tpu.vector_store %arg4[%c60, %c0_21], %36 {strides = array<i32>} : memref<128x1024xf32, #tpu.memory_space<vmem>>, vector<4x1024xf32>,
    %38 = vector.extract_strided_slice %1 {offsets = [0, 138], sizes = [4, 1024], strides = [1, 1]} : vector<4x1280xf32> to vector<4x1024xf32>
    %c64 = arith.constant 64 : index
    %c0_22 = arith.constant 0 : index
    %39 = vector.load %arg4[%c64, %c0_22] : memref<128x1024xf32, #tpu.memory_space<vmem>>, vector<4x1024xf32>
    tpu.vector_store %arg4[%c64, %c0_22], %38 {strides = array<i32>} : memref<128x1024xf32, #tpu.memory_space<vmem>>, vector<4x1024xf32>,
    %40 = vector.extract_strided_slice %1 {offsets = [0, 139], sizes = [4, 1024], strides = [1, 1]} : vector<4x1280xf32> to vector<4x1024xf32>
    %c68 = arith.constant 68 : index
    %c0_23 = arith.constant 0 : index
    %41 = vector.load %arg4[%c68, %c0_23] : memref<128x1024xf32, #tpu.memory_space<vmem>>, vector<4x1024xf32>
    tpu.vector_store %arg4[%c68, %c0_23], %40 {strides = array<i32>} : memref<128x1024xf32, #tpu.memory_space<vmem>>, vector<4x1024xf32>,
    %42 = vector.extract_strided_slice %1 {offsets = [0, 217], sizes = [4, 1024], strides = [1, 1]} : vector<4x1280xf32> to vector<4x1024xf32>
    %c72 = arith.constant 72 : index
    %c0_24 = arith.constant 0 : index
    %43 = vector.load %arg4[%c72, %c0_24] : memref<128x1024xf32, #tpu.memory_space<vmem>>, vector<4x1024xf32>
    tpu.vector_store %arg4[%c72, %c0_24], %42 {strides = array<i32>} : memref<128x1024xf32, #tpu.memory_space<vmem>>, vector<4x1024xf32>,
    %44 = vector.extract_strided_slice %1 {offsets = [0, 218], sizes = [4, 1024], strides = [1, 1]} : vector<4x1280xf32> to vector<4x1024xf32>
    %c76 = arith.constant 76 : index
    %c0_25 = arith.constant 0 : index
    %45 = vector.load %arg4[%c76, %c0_25] : memref<128x1024xf32, #tpu.memory_space<vmem>>, vector<4x1024xf32>
    tpu.vector_store %arg4[%c76, %c0_25], %44 {strides = array<i32>} : memref<128x1024xf32, #tpu.memory_space<vmem>>, vector<4x1024xf32>,
    %46 = vector.extract_strided_slice %1 {offsets = [0, 219], sizes = [4, 1024], strides = [1, 1]} : vector<4x1280xf32> to vector<4x1024xf32>
    %c80 = arith.constant 80 : index
    %c0_26 = arith.constant 0 : index
    %47 = vector.load %arg4[%c80, %c0_26] : memref<128x1024xf32, #tpu.memory_space<vmem>>, vector<4x1024xf32>
    tpu.vector_store %arg4[%c80, %c0_26], %46 {strides = array<i32>} : memref<128x1024xf32, #tpu.memory_space<vmem>>, vector<4x1024xf32>,
    %48 = vector.extract_strided_slice %1 {offsets = [0, 227], sizes = [4, 1024], strides = [1, 1]} : vector<4x1280xf32> to vector<4x1024xf32>
    %c84 = arith.constant 84 : index
    %c0_27 = arith.constant 0 : index
    %49 = vector.load %arg4[%c84, %c0_27] : memref<128x1024xf32, #tpu.memory_space<vmem>>, vector<4x1024xf32>
    tpu.vector_store %arg4[%c84, %c0_27], %48 {strides = array<i32>} : memref<128x1024xf32, #tpu.memory_space<vmem>>, vector<4x1024xf32>,
    %50 = vector.extract_strided_slice %1 {offsets = [0, 228], sizes = [4, 1024], strides = [1, 1]} : vector<4x1280xf32> to vector<4x1024xf32>
    %c88 = arith.constant 88 : index
    %c0_28 = arith.constant 0 : index
    %51 = vector.load %arg4[%c88, %c0_28] : memref<128x1024xf32, #tpu.memory_space<vmem>>, vector<4x1024xf32>
    tpu.vector_store %arg4[%c88, %c0_28], %50 {strides = array<i32>} : memref<128x1024xf32, #tpu.memory_space<vmem>>, vector<4x1024xf32>,
    %52 = vector.extract_strided_slice %1 {offsets = [0, 229], sizes = [4, 1024], strides = [1, 1]} : vector<4x1280xf32> to vector<4x1024xf32>
    %c92 = arith.constant 92 : index
    %c0_29 = arith.constant 0 : index
    %53 = vector.load %arg4[%c92, %c0_29] : memref<128x1024xf32, #tpu.memory_space<vmem>>, vector<4x1024xf32>
    tpu.vector_store %arg4[%c92, %c0_29], %52 {strides = array<i32>} : memref<128x1024xf32, #tpu.memory_space<vmem>>, vector<4x1024xf32>,
    %54 = vector.extract_strided_slice %1 {offsets = [0, 237], sizes = [4, 1024], strides = [1, 1]} : vector<4x1280xf32> to vector<4x1024xf32>
    %c96 = arith.constant 96 : index
    %c0_30 = arith.constant 0 : index
    %55 = vector.load %arg4[%c96, %c0_30] : memref<128x1024xf32, #tpu.memory_space<vmem>>, vector<4x1024xf32>
    tpu.vector_store %arg4[%c96, %c0_30], %54 {strides = array<i32>} : memref<128x1024xf32, #tpu.memory_space<vmem>>, vector<4x1024xf32>,
    %56 = vector.extract_strided_slice %1 {offsets = [0, 238], sizes = [4, 1024], strides = [1, 1]} : vector<4x1280xf32> to vector<4x1024xf32>
    %c100 = arith.constant 100 : index
    %c0_31 = arith.constant 0 : index
    %57 = vector.load %arg4[%c100, %c0_31] : memref<128x1024xf32, #tpu.memory_space<vmem>>, vector<4x1024xf32>
    tpu.vector_store %arg4[%c100, %c0_31], %56 {strides = array<i32>} : memref<128x1024xf32, #tpu.memory_space<vmem>>, vector<4x1024xf32>,
    %58 = vector.extract_strided_slice %1 {offsets = [0, 239], sizes = [4, 1024], strides = [1, 1]} : vector<4x1280xf32> to vector<4x1024xf32>
    %c104 = arith.constant 104 : index
    %c0_32 = arith.constant 0 : index
    %59 = vector.load %arg4[%c104, %c0_32] : memref<128x1024xf32, #tpu.memory_space<vmem>>, vector<4x1024xf32>
    tpu.vector_store %arg4[%c104, %c0_32], %58 {strides = array<i32>} : memref<128x1024xf32, #tpu.memory_space<vmem>>, vector<4x1024xf32>,
    %c0_33 = arith.constant 0 : index
    %c0_34 = arith.constant 0 : index
    %60 = vector.load %arg2[%c0_33, %c0_34] : memref<4x128xf32, #tpu.memory_space<vmem>>, vector<4x128xf32>
    %c0_35 = arith.constant 0 : index
    %c0_36 = arith.constant 0 : index
    %61 = vector.load %arg4[%c0_35, %c0_36] : memref<128x1024xf32, #tpu.memory_space<vmem>>, vector<128x1024xf32>
    %cst_37 = arith.constant dense<0.000000e+00> : vector<4x1024xf32>
    %62 = tpu.matmul %60, %61, %cst_37 {dimension_numbers = #tpu.dot_dimension_numbers<[1], [0], [0], [1], [0, 0, 1, 1], [], []>} : vector<4x128xf32>, vector<128x1024xf32>, vector<4x1024xf32> -> vector<4x1024xf32>
    %63 = vector.extract_strided_slice %1 {offsets = [0, 128], sizes = [4, 1024], strides = [1, 1]} : vector<4x1280xf32> to vector<4x1024xf32>
    %cst_38 = arith.constant 0.000000e+00 : f32
    %64 = vector.broadcast %cst_38 : f32 to vector<4x1024xf32>
    %65 = arith.maximumf %62, %64 : vector<4x1024xf32>
    %66 = arith.addf %65, %63 : vector<4x1024xf32>
    %c0_39 = arith.constant 0 : index
    %c0_40 = arith.constant 0 : index
    %c0_41 = arith.constant 0 : index
    %67 = vector.load %arg3[%c0_39, %c0_40, %c0_41] : memref<1x4x1024xf32, #tpu.memory_space<vmem>>, vector<1x4x1024xf32>
    %68 = vector.shape_cast %67 : vector<1x4x1024xf32> to vector<4x1024xf32>
    %69 = vector.shape_cast %66 : vector<4x1024xf32> to vector<1x4x1024xf32>
    tpu.vector_store %arg3[%c0_39, %c0_40, %c0_41], %69 {strides = array<i32>} : memref<1x4x1024xf32, #tpu.memory_space<vmem>>, vector<1x4x1024xf32>,
    return
  }
  func.func @transform_0(%arg0: i32) -> (i32, i32, i32) {
    %c0_i32 = arith.constant 0 : i32
    %c0_i32_0 = arith.constant 0 : i32
    %c0_i32_1 = arith.constant 0 : i32
    return %arg0, %c0_i32, %c0_i32_0 : i32, i32, i32
  }
  func.func @transform_1(%arg0: i32) -> (i32, i32) {
    %c0_i32 = arith.constant 0 : i32
    %c0_i32_0 = arith.constant 0 : i32
    %c0_i32_1 = arith.constant 0 : i32
    return %c0_i32, %c0_i32_0 : i32, i32
  }
  func.func @transform_2(%arg0: i32) -> (i32, i32, i32) {
    %c0_i32 = arith.constant 0 : i32
    %c0_i32_0 = arith.constant 0 : i32
    %c0_i32_1 = arith.constant 0 : i32
    return %arg0, %c0_i32, %c0_i32_0 : i32, i32, i32
  }
}

</mosaic_0001>

<llo_original>
// kernel: tpu_custom_call.1
$region0: #{tpu_custom_call.1}
  #allocation0 [shape = 'u32[]', space=smem, size = 0x4, offset = 0x4, fixed_abs, tag = 'smem constant byte address 0x4 - core index']
  #allocation1 [shape = 'u32[72,128]{1,0:T(1,128)}', space=vmem, size = 0x9000, scoped, tag = 'internal scratch']
  #allocation2 [shape = 'f32[128,1024]{1,0:T(8,128)}', space=vmem, size = 0x80000, scoped, tag = 'scratch operand']
  %s0 = inlined_call_operand.hbm [shape: f32[2,4,1280], index: 0, kind: input, shape index: {}]
  %s1 = inlined_call_operand.hbm [shape: f32[4,128], index: 1, kind: input, shape index: {}]
  %s2 = inlined_call_operand.hbm [shape: f32[2,4,1024], index: 2, kind: output, shape index: {}]
  %s3 = sld [smem:[#allocation0]]
  $region49: #{tpu_custom_call.1} parent=0
    _
  %s5 = ssub.s32 1, %s3
  %s6 = scalar_select 0, %s5, %s3
  $region1: #{tpu_custom_call.1} parent=0
    #allocation3 [shape = 'u8[40960]{0}', space=vmem, size = 0xa000, scoped, tag = 'input window, operand 0']
    #allocation4 [shape = 's32[2]{0}', space=sflag, size = 0x8, scoped, tag = 'scoped memory for tpu_custom_call.1']
    #allocation5 [shape = 's32[2]{0}', space=sflag, size = 0x8, scoped, tag = 'scoped memory for tpu_custom_call.1']
    #allocation6 [shape = 'u8[2048]{0}', space=vmem, size = 0x800, scoped, tag = 'input window, operand 1, single buffered']
    #allocation7 [shape = 's32[1]{0}', space=sflag, size = 0x4, scoped, tag = 'scoped memory for tpu_custom_call.1']
    #allocation8 [shape = 'u8[32768]{0}', space=vmem, size = 0x8000, scoped, tag = 'output window, operand 0']
    %7 = vsyncpa [#allocation4], 0
    %s8 = scalar_lea.sflag [#allocation4], 1
    %9 = vsyncpa %s8, 0
    %10 = vsyncpa [#allocation7], 0
    %11 = vsyncpa [#allocation5], 0
    %s12 = scalar_lea.sflag [#allocation5], 1
    %13 = vsyncpa %s12, 0
    loop: start=0, step=1, limit=4
    $region2: #{tpu_custom_call.1} parent=1 // loop_pre_header
      _
    $region3: #{tpu_custom_call.1} parent=1 // loop_header
      %s15 = sphi 0, %s19
      %p16 = scmp.ge.s32.totalorder %s15, 4
      %s25 = sphi 0, %s27
      %s28 = sphi 0, %s25
      %s29 = sphi 0, %s28
      %s45 = sphi 0, %s29
      %s49 = sphi 0, %s49
      %s51 = sphi 0, %s49
      %s52 = sphi 0, %s51
      %s66 = sphi 0, %s52
      %s72 = sphi 0, %s74
      %s75 = sphi 0, %s72
      %s76 = sphi 0, %s75
      %s92 = sphi 0, %s76
    $region4: #{tpu_custom_call.1} parent=1 // loop_header_branch
      %18 = sbr.rel (%p16) target = $region8
    $region5: #{tpu_custom_call.1} parent=1 // loop_body
      %s20 = ssub.s32 %s15, 1
      %s21 = ssub.s32 %s15, 2
      %s22 = sadd.s32 %s15, 1
      %s23 = ssub.s32 %s15, %s22
      %p24 = scmp.eq.s32.totalorder %s23, 0
      %s26 = sadd.s32 %s25, 1
      %s27 = scalar_select %p24, %s25, %s26
      %p30 = pneg %p24
      %p31 = scmp.eq.s32.totalorder %s15, 1
      %p32 = por %p30, %p31
      %p33 = scmp.ne.s32.totalorder %s25, %s28
      %p34 = scmp.eq.s32.totalorder %s15, 0
      %p35 = por %p33, %p34
      %p36 = scmp.ne.s32.totalorder %s25, %s28
      %p37 = scmp.eq.s32.totalorder %s20, 1
      %p38 = por %p36, %p37
      %p39 = scmp.ne.s32.totalorder %s28, %s29
      %p40 = scmp.eq.s32.totalorder %s20, 0
      %p41 = por %p39, %p40
      %p42 = scmp.ne.s32.totalorder %s28, %s29
      %p43 = scmp.eq.s32.totalorder %s21, 1
      %p44 = por %p42, %p43
      %p46 = scmp.ne.s32.totalorder %s29, %s45
      %p47 = scmp.eq.s32.totalorder %s21, 0
      %p48 = por %p46, %p47
      %s50 = sadd.s32 %s49, 1
      %p53 = scmp.eq.s32.totalorder %s15, 1
      %p54 = scmp.ne.s32.totalorder %s49, %s51
      %p55 = scmp.eq.s32.totalorder %s15, 0
      %p56 = por %p54, %p55
      %p57 = scmp.ne.s32.totalorder %s49, %s51
      %p58 = scmp.eq.s32.totalorder %s20, 1
      %p59 = por %p57, %p58
      %p60 = scmp.ne.s32.totalorder %s51, %s52
      %p61 = scmp.eq.s32.totalorder %s20, 0
      %p62 = por %p60, %p61
      %p63 = scmp.ne.s32.totalorder %s51, %s52
      %p64 = scmp.eq.s32.totalorder %s21, 1
      %p65 = por %p63, %p64
      %p67 = scmp.ne.s32.totalorder %s52, %s66
      %p68 = scmp.eq.s32.totalorder %s21, 0
      %p69 = por %p67, %p68
      %s70 = ssub.s32 %s15, %s22
      %p71 = scmp.eq.s32.totalorder %s70, 0
      %s73 = sadd.s32 %s72, 1
      %s74 = scalar_select %p71, %s72, %s73
      %p77 = pneg %p71
      %p78 = scmp.eq.s32.totalorder %s15, 1
      %p79 = por %p77, %p78
      %p80 = scmp.ne.s32.totalorder %s72, %s75
      %p81 = scmp.eq.s32.totalorder %s15, 0
      %p82 = por %p80, %p81
      %p83 = scmp.ne.s32.totalorder %s72, %s75
      %p84 = scmp.eq.s32.totalorder %s20, 1
      %p85 = por %p83, %p84
      %p86 = scmp.ne.s32.totalorder %s75, %s76
      %p87 = scmp.eq.s32.totalorder %s20, 0
      %p88 = por %p86, %p87
      %p89 = scmp.ne.s32.totalorder %s75, %s76
      %p90 = scmp.eq.s32.totalorder %s21, 1
      %p91 = por %p89, %p90
      %p93 = scmp.ne.s32.totalorder %s76, %s92
      %p94 = scmp.eq.s32.totalorder %s21, 0
      %p95 = por %p93, %p94
      %p96 = scmp.le.s32.totalorder 1, %s15
      %p97 = scmp.lt.s32.totalorder %s15, 3
      %p98 = pnand %p96, %p97
      %p99 = pneg %p98
      // Predicated region
      $region9: #{tpu_custom_call.1} parent=5 // pred_check
        _
      $region10: #{tpu_custom_call.1} parent=5 // pred_check_branch
        %101 = sbr.rel (%p98) target = $region12
      $region11: #{tpu_custom_call.1} parent=5 // pred_region
        %s102 = ssub.s32 %s15, 1
        // Predicated region
        $region13: #{tpu_custom_call.1} parent=11 // pred_check
          %p103 = pneg %p62
        $region14: #{tpu_custom_call.1} parent=11 // pred_check_branch
          %105 = sbr.rel (%p103) target = $region16
        $region15: #{tpu_custom_call.1} parent=11 // pred_region
          %107 = vsyncadd [#allocation7], 0
          %s109 = sshll.u32 %s1, 4
          %s110 = int_to_ptr.hbm [resolvable:$true] %s109
          %s111 = sshll.u32 [#allocation6], 4
          %s112 = int_to_ptr.vmem [resolvable:$true] %s111
          %114 = dma.hbm_to_vmem [thread:$0]  %s110, 64, %s112, [#allocation7]
        $region16: #{tpu_custom_call.1} parent=11 // pred_fallthru
          _
      $region12: #{tpu_custom_call.1} parent=5 // pred_fallthru
        _
      %p115 = scmp.lt.s32.totalorder %s15, 2
      // Predicated region
      $region17: #{tpu_custom_call.1} parent=5 // pred_check
        %p116 = pneg %p115
      $region18: #{tpu_custom_call.1} parent=5 // pred_check_branch
        %118 = sbr.rel (%p116) target = $region20
      $region19: #{tpu_custom_call.1} parent=5 // pred_region
        // Predicated region
        $region21: #{tpu_custom_call.1} parent=19 // pred_check
          %p119 = pneg %p35
        $region22: #{tpu_custom_call.1} parent=19 // pred_check_branch
          %121 = sbr.rel (%p119) target = $region24
        $region23: #{tpu_custom_call.1} parent=19 // pred_region
          %s122 = sand.u32 %s25, 1
          %s123 = scalar_lea.sflag [#allocation4], %s122
          %s124 = sand.u32 %s25, 1
          %s125 = smul.addr %s124, 40
          %s126 = scalar_lea.vmem [#allocation3], %s125
          %128 = vsyncadd %s123, 0
          %s129 = smul.addr %s15, 10
          %s130 = smul.addr %s129, 4
          %s131 = scalar_lea.hbm %s0, %s130
          %s133 = sshll.u32 %s131, 4
          %s134 = int_to_ptr.hbm [resolvable:$true] %s133
          %s135 = sshll.u32 %s126, 4
          %s136 = int_to_ptr.vmem [resolvable:$true] %s135
          %138 = dma.hbm_to_vmem [thread:$0]  %s134, 640, %s136, %s123
        $region24: #{tpu_custom_call.1} parent=19 // pred_fallthru
          _
      $region20: #{tpu_custom_call.1} parent=5 // pred_fallthru
        _
      %p139 = scmp.le.s32.totalorder 1, %s15
      %p140 = scmp.lt.s32.totalorder %s15, 3
      %p141 = pnand %p139, %p140
      %p142 = pneg %p141
      // Predicated region
      $region25: #{tpu_custom_call.1} parent=5 // pred_check
        _
      $region26: #{tpu_custom_call.1} parent=5 // pred_check_branch
        %144 = sbr.rel (%p141) target = $region28
      $region27: #{tpu_custom_call.1} parent=5 // pred_region
        %s145 = ssub.s32 %s15, 1
        %s146 = sand.u32 %s28, 1
        %s147 = scalar_lea.sflag [#allocation4], %s146
        %s148 = sand.u32 %s28, 1
        %s149 = smul.addr %s148, 40
        %s150 = scalar_lea.vmem [#allocation3], %s149
        // Predicated region
        $region29: #{tpu_custom_call.1} parent=27 // pred_check
          %p151 = pneg %p41
        $region30: #{tpu_custom_call.1} parent=27 // pred_check_branch
          %153 = sbr.rel (%p151) target = $region32
        $region31: #{tpu_custom_call.1} parent=27 // pred_region
          %155 = dma.done %s147, 640
        $region32: #{tpu_custom_call.1} parent=27 // pred_fallthru
          _
        // Predicated region
        $region33: #{tpu_custom_call.1} parent=27 // pred_check
          %p156 = pneg %p62
        $region34: #{tpu_custom_call.1} parent=27 // pred_check_branch
          %158 = sbr.rel (%p156) target = $region36
        $region35: #{tpu_custom_call.1} parent=27 // pred_region
          %160 = dma.done [#allocation7], 64
        $region36: #{tpu_custom_call.1} parent=27 // pred_fallthru
          _
        %s161 = sand.u32 %s28, 1
        %s162 = scalar_lea.sflag [#allocation4], %s161
        %s163 = sand.u32 %s28, 1
        %s164 = smul.addr %s163, 40
        %s165 = scalar_lea.vmem [#allocation3], %s164
        %p166 = pneg %p41
        %p167 = pneg %p38
        %p168 = pneg %p62
        %p169 = pneg %p59
        %p170 = pneg %p88
        %p171 = pneg %p85
        %s172 = sand.u32 %s75, 1
        %s173 = scalar_lea.sflag [#allocation5], %s172
        %s174 = sand.u32 %s75, 1
        %s175 = smul.addr %s174, 32
        %s176 = scalar_lea.vmem [#allocation8], %s175
        %v177 = vld [vmem:[%s150] sm:$0xff]
        %v178 = vld [vmem:[%s150 + $0x8] sm:$0xff]
        %v179 = vld [vmem:[%s150 + $0x10] sm:$0xff]
        %v180 = vld [vmem:[%s150 + $0x18] sm:$0xff]
        %v181 = vld [vmem:[%s150 + $0x20] sm:$0xff]
        %s182 = scalar_lea.vmem [#allocation2], 836
        %183 = vst [vmem:[%s182] ss:$8 sm:$0xf] 1.0
        %184 = vst [vmem:[%s182] ss:$8 sm:$0xf0] 1.0
        %185 = vst [vmem:[#allocation2 + $0x340] sm:$0xe0] 0.0
        %186 = vst [vmem:[#allocation2 + $0x348] sm:$0xe0] 0.0
        %187 = vst [vmem:[#allocation2 + $0x350] sm:$0xe0] 0.0
        %188 = vst [vmem:[#allocation2 + $0x358] sm:$0xe0] 0.0
        %189 = vst [vmem:[#allocation2 + $0x360] sm:$0xe0] 0.0
        %190 = vst [vmem:[#allocation2 + $0x368] sm:$0xe0] 0.0
        %191 = vst [vmem:[#allocation2 + $0x370] sm:$0xe0] 0.0
        %192 = vst [vmem:[#allocation2 + $0x378] sm:$0xe0] 0.0
        %193 = vst [vmem:[#allocation2 + $0x380] sm:$0xff] 0.0
        %194 = vst [vmem:[#allocation2 + $0x388] sm:$0xff] 0.0
        %195 = vst [vmem:[#allocation2 + $0x390] sm:$0xff] 0.0
        %196 = vst [vmem:[#allocation2 + $0x398] sm:$0xff] 0.0
        %197 = vst [vmem:[#allocation2 + $0x3a0] sm:$0xff] 0.0
        %198 = vst [vmem:[#allocation2 + $0x3a8] sm:$0xff] 0.0
        %199 = vst [vmem:[#allocation2 + $0x3b0] sm:$0xff] 0.0
        %200 = vst [vmem:[#allocation2 + $0x3b8] sm:$0xff] 0.0
        %201 = vst [vmem:[#allocation2 + $0x3c0] sm:$0xff] 0.0
        %202 = vst [vmem:[#allocation2 + $0x3c8] sm:$0xff] 0.0
        %203 = vst [vmem:[#allocation2 + $0x3d0] sm:$0xff] 0.0
        %204 = vst [vmem:[#allocation2 + $0x3d8] sm:$0xff] 0.0
        %205 = vst [vmem:[#allocation2 + $0x3e0] sm:$0xff] 0.0
        %206 = vst [vmem:[#allocation2 + $0x3e8] sm:$0xff] 0.0
        %207 = vst [vmem:[#allocation2 + $0x3f0] sm:$0xff] 0.0
        %208 = vst [vmem:[#allocation2 + $0x3f8] sm:$0xff] 0.0
        %214 = vst [vmem:[#allocation1] ss:$2 sm:$0xff] %v177
        %s215 = scalar_lea.vmem [#allocation1], 16
        %216 = vst [vmem:[%s215] ss:$2 sm:$0xff] %v178
        %s217 = scalar_lea.vmem [#allocation1], 32
        %218 = vst [vmem:[%s217] ss:$2 sm:$0xff] %v179
        %s219 = scalar_lea.vmem [#allocation1], 48
        %220 = vst [vmem:[%s219] ss:$2 sm:$0xff] %v180
        %v221 = vld.sshfl [vmem:[#allocation1] sm:$0xff pattern:$0x75316420]
        %v222 = vld.sshfl [vmem:[#allocation1 + $0x8] sm:$0xff pattern:$0x75316420]
        %v223 = vld.sshfl [vmem:[#allocation1 + $0x10] sm:$0xff pattern:$0x75316420]
        %v224 = vld.sshfl [vmem:[#allocation1 + $0x18] sm:$0xff pattern:$0x75316420]
        %v225 = vld.sshfl [vmem:[#allocation1 + $0x20] sm:$0xff pattern:$0x75316420]
        %v226 = vld.sshfl [vmem:[#allocation1 + $0x28] sm:$0xff pattern:$0x75316420]
        %v227 = vld.sshfl [vmem:[#allocation1 + $0x30] sm:$0xff pattern:$0x75316420]
        %v228 = vld.sshfl [vmem:[#allocation1 + $0x38] sm:$0xff pattern:$0x75316420]
        %229 = vst [vmem:[#allocation1] ss:$2 sm:$0xff] %v181
        %v230 = vld.sshfl [vmem:[#allocation1] sm:$0xff pattern:$0x75316420]
        %231 = vrot.lane.b32.xlu0 %v221, 111
        %v232 = vpop.permute.xlu0 %231
        %233 = vrot.lane.b32.xlu0 %v222, 111
        %v234 = vpop.permute.xlu0 %233
        %235 = vrot.lane.b32.xlu0 %v223, 111
        %v236 = vpop.permute.xlu0 %235
        %237 = vrot.lane.b32.xlu0 %v224, 111
        %v238 = vpop.permute.xlu0 %237
        %239 = vrot.lane.b32.xlu0 %v225, 111
        %v240 = vpop.permute.xlu0 %239
        %241 = vrot.lane.b32.xlu0 %v226, 111
        %v242 = vpop.permute.xlu0 %241
        %243 = vrot.lane.b32.xlu0 %v227, 111
        %v244 = vpop.permute.xlu0 %243
        %245 = vrot.lane.b32.xlu0 %v228, 111
        %v246 = vpop.permute.xlu0 %245
        %247 = vrot.lane.b32.xlu0 %v230, 111
        %v248 = vpop.permute.xlu0 %247
        %vm249 = vcmask 908288
        %v250 = vsel %vm249, %v232, %v234
        %v251 = vsel %vm249, %v234, %v236
        %v252 = vsel %vm249, %v236, %v238
        %v253 = vsel %vm249, %v238, %v240
        %v254 = vsel %vm249, %v240, %v242
        %v255 = vsel %vm249, %v242, %v244
        %v256 = vsel %vm249, %v244, %v246
        %v257 = vsel %vm249, %v246, %v248
        %266 = vst [vmem:[#allocation2] sm:$0xf] %v250
        %267 = vst [vmem:[#allocation2 + $0x8] sm:$0xf] %v251
        %268 = vst [vmem:[#allocation2 + $0x10] sm:$0xf] %v252
        %269 = vst [vmem:[#allocation2 + $0x18] sm:$0xf] %v253
        %270 = vst [vmem:[#allocation2 + $0x20] sm:$0xf] %v254
        %271 = vst [vmem:[#allocation2 + $0x28] sm:$0xf] %v255
        %272 = vst [vmem:[#allocation2 + $0x30] sm:$0xf] %v256
        %273 = vst [vmem:[#allocation2 + $0x38] sm:$0xf] %v257
        %s274 = scalar_lea.vmem [#allocation1], 1
        %275 = vst [vmem:[%s274] ss:$2 sm:$0xff] %v177
        %s276 = scalar_lea.vmem [#allocation1], 17
        %277 = vst [vmem:[%s276] ss:$2 sm:$0xff] %v178
        %s278 = scalar_lea.vmem [#allocation1], 33
        %279 = vst [vmem:[%s278] ss:$2 sm:$0xff] %v179
        %s280 = scalar_lea.vmem [#allocation1], 49
        %281 = vst [vmem:[%s280] ss:$2 sm:$0xff] %v180
        %v282 = vld.sshfl [vmem:[#allocation1] sm:$0xff pattern:$0x75316420]
        %v283 = vld.sshfl [vmem:[#allocation1 + $0x8] sm:$0xff pattern:$0x75316420]
        %v284 = vld.sshfl [vmem:[#allocation1 + $0x10] sm:$0xff pattern:$0x75316420]
        %v285 = vld.sshfl [vmem:[#allocation1 + $0x18] sm:$0xff pattern:$0x75316420]
        %v286 = vld.sshfl [vmem:[#allocation1 + $0x20] sm:$0xff pattern:$0x75316420]
        %v287 = vld.sshfl [vmem:[#allocation1 + $0x28] sm:$0xff pattern:$0x75316420]
        %v288 = vld.sshfl [vmem:[#allocation1 + $0x30] sm:$0xff pattern:$0x75316420]
        %v289 = vld.sshfl [vmem:[#allocation1 + $0x38] sm:$0xff pattern:$0x75316420]
        %290 = vst [vmem:[%s274] ss:$2 sm:$0xff] %v181
        %v291 = vld.sshfl [vmem:[#allocation1] sm:$0xff pattern:$0x75316420]
        %292 = vrot.lane.b32.xlu0 %v282, 110
        %v293 = vpop.permute.xlu0 %292
        %294 = vrot.lane.b32.xlu0 %v283, 110
        %v295 = vpop.permute.xlu0 %294
        %296 = vrot.lane.b32.xlu0 %v284, 110
        %v297 = vpop.permute.xlu0 %296
        %298 = vrot.lane.b32.xlu0 %v285, 110
        %v299 = vpop.permute.xlu0 %298
        %300 = vrot.lane.b32.xlu0 %v286, 110
        %v301 = vpop.permute.xlu0 %300
        %302 = vrot.lane.b32.xlu0 %v287, 110
        %v303 = vpop.permute.xlu0 %302
        %304 = vrot.lane.b32.xlu0 %v288, 110
        %v305 = vpop.permute.xlu0 %304
        %306 = vrot.lane.b32.xlu0 %v289, 110
        %v307 = vpop.permute.xlu0 %306
        %308 = vrot.lane.b32.xlu0 %v291, 110
        %v309 = vpop.permute.xlu0 %308
        %vm310 = vcmask 900096
        %v311 = vsel %vm310, %v293, %v295
        %v312 = vsel %vm310, %v295, %v297
        %v313 = vsel %vm310, %v297, %v299
        %v314 = vsel %vm310, %v299, %v301
        %v315 = vsel %vm310, %v301, %v303
        %v316 = vsel %vm310, %v303, %v305
        %v317 = vsel %vm310, %v305, %v307
        %v318 = vsel %vm310, %v307, %v309
        %327 = vst [vmem:[#allocation2] sm:$0xf0] %v311
        %328 = vst [vmem:[#allocation2 + $0x8] sm:$0xf0] %v312
        %329 = vst [vmem:[#allocation2 + $0x10] sm:$0xf0] %v313
        %330 = vst [vmem:[#allocation2 + $0x18] sm:$0xf0] %v314
        %331 = vst [vmem:[#allocation2 + $0x20] sm:$0xf0] %v315
        %332 = vst [vmem:[#allocation2 + $0x28] sm:$0xf0] %v316
        %333 = vst [vmem:[#allocation2 + $0x30] sm:$0xf0] %v317
        %334 = vst [vmem:[#allocation2 + $0x38] sm:$0xf0] %v318
        %335 = vst [vmem:[#allocation1] ss:$2 sm:$0xff] %v177
        %s336 = scalar_lea.vmem [#allocation1], 16
        %337 = vst [vmem:[%s336] ss:$2 sm:$0xff] %v178
        %s338 = scalar_lea.vmem [#allocation1], 32
        %339 = vst [vmem:[%s338] ss:$2 sm:$0xff] %v179
        %s340 = scalar_lea.vmem [#allocation1], 48
        %341 = vst [vmem:[%s340] ss:$2 sm:$0xff] %v180
        %v342 = vld.sshfl [vmem:[#allocation1] sm:$0xff pattern:$0x75316420]
        %v343 = vld.sshfl [vmem:[#allocation1 + $0x8] sm:$0xff pattern:$0x75316420]
        %v344 = vld.sshfl [vmem:[#allocation1 + $0x10] sm:$0xff pattern:$0x75316420]
        %v345 = vld.sshfl [vmem:[#allocation1 + $0x18] sm:$0xff pattern:$0x75316420]
        %v346 = vld.sshfl [vmem:[#allocation1 + $0x20] sm:$0xff pattern:$0x75316420]
        %v347 = vld.sshfl [vmem:[#allocation1 + $0x28] sm:$0xff pattern:$0x75316420]
        %v348 = vld.sshfl [vmem:[#allocation1 + $0x30] sm:$0xff pattern:$0x75316420]
        %v349 = vld.sshfl [vmem:[#allocation1 + $0x38] sm:$0xff pattern:$0x75316420]
        %350 = vst [vmem:[#allocation1] ss:$2 sm:$0xff] %v181
        %v351 = vld.sshfl [vmem:[#allocation1] sm:$0xff pattern:$0x75316420]
        %352 = vrot.lane.b32.xlu0 %v342, 109
        %v353 = vpop.permute.xlu0 %352
        %354 = vrot.lane.b32.xlu0 %v343, 109
        %v355 = vpop.permute.xlu0 %354
        %356 = vrot.lane.b32.xlu0 %v344, 109
        %v357 = vpop.permute.xlu0 %356
        %358 = vrot.lane.b32.xlu0 %v345, 109
        %v359 = vpop.permute.xlu0 %358
        %360 = vrot.lane.b32.xlu0 %v346, 109
        %v361 = vpop.permute.xlu0 %360
        %362 = vrot.lane.b32.xlu0 %v347, 109
        %v363 = vpop.permute.xlu0 %362
        %364 = vrot.lane.b32.xlu0 %v348, 109
        %v365 = vpop.permute.xlu0 %364
        %366 = vrot.lane.b32.xlu0 %v349, 109
        %v367 = vpop.permute.xlu0 %366
        %368 = vrot.lane.b32.xlu0 %v351, 109
        %v369 = vpop.permute.xlu0 %368
        %vm370 = vcmask 891904
        %v371 = vsel %vm370, %v353, %v355
        %v372 = vsel %vm370, %v355, %v357
        %v373 = vsel %vm370, %v357, %v359
        %v374 = vsel %vm370, %v359, %v361
        %v375 = vsel %vm370, %v361, %v363
        %v376 = vsel %vm370, %v363, %v365
        %v377 = vsel %vm370, %v365, %v367
        %v378 = vsel %vm370, %v367, %v369
        %387 = vst [vmem:[#allocation2 + $0x40] sm:$0xf] %v371
        %388 = vst [vmem:[#allocation2 + $0x48] sm:$0xf] %v372
        %389 = vst [vmem:[#allocation2 + $0x50] sm:$0xf] %v373
        %390 = vst [vmem:[#allocation2 + $0x58] sm:$0xf] %v374
        %391 = vst [vmem:[#allocation2 + $0x60] sm:$0xf] %v375
        %392 = vst [vmem:[#allocation2 + $0x68] sm:$0xf] %v376
        %393 = vst [vmem:[#allocation2 + $0x70] sm:$0xf] %v377
        %394 = vst [vmem:[#allocation2 + $0x78] sm:$0xf] %v378
        %s395 = scalar_lea.vmem [#allocation1], 1
        %396 = vst [vmem:[%s395] ss:$2 sm:$0xff] %v177
        %s397 = scalar_lea.vmem [#allocation1], 17
        %398 = vst [vmem:[%s397] ss:$2 sm:$0xff] %v178
        %s399 = scalar_lea.vmem [#allocation1], 33
        %400 = vst [vmem:[%s399] ss:$2 sm:$0xff] %v179
        %s401 = scalar_lea.vmem [#allocation1], 49
        %402 = vst [vmem:[%s401] ss:$2 sm:$0xff] %v180
        %v403 = vld.sshfl [vmem:[#allocation1] sm:$0xff pattern:$0x75316420]
        %v404 = vld.sshfl [vmem:[#allocation1 + $0x8] sm:$0xff pattern:$0x75316420]
        %v405 = vld.sshfl [vmem:[#allocation1 + $0x10] sm:$0xff pattern:$0x75316420]
        %v406 = vld.sshfl [vmem:[#allocation1 + $0x18] sm:$0xff pattern:$0x75316420]
        %v407 = vld.sshfl [vmem:[#allocation1 + $0x20] sm:$0xff pattern:$0x75316420]
        %v408 = vld.sshfl [vmem:[#allocation1 + $0x28] sm:$0xff pattern:$0x75316420]
        %v409 = vld.sshfl [vmem:[#allocation1 + $0x30] sm:$0xff pattern:$0x75316420]
        %v410 = vld.sshfl [vmem:[#allocation1 + $0x38] sm:$0xff pattern:$0x75316420]
        %411 = vst [vmem:[%s395] ss:$2 sm:$0xff] %v181
        %v412 = vld.sshfl [vmem:[#allocation1] sm:$0xff pattern:$0x75316420]
        %413 = vrot.lane.b32.xlu0 %v403, 101
        %v414 = vpop.permute.xlu0 %413
        %415 = vrot.lane.b32.xlu0 %v404, 101
        %v416 = vpop.permute.xlu0 %415
        %417 = vrot.lane.b32.xlu0 %v405, 101
        %v418 = vpop.permute.xlu0 %417
        %419 = vrot.lane.b32.xlu0 %v406, 101
        %v420 = vpop.permute.xlu0 %419
        %421 = vrot.lane.b32.xlu0 %v407, 101
        %v422 = vpop.permute.xlu0 %421
        %423 = vrot.lane.b32.xlu0 %v408, 101
        %v424 = vpop.permute.xlu0 %423
        %425 = vrot.lane.b32.xlu0 %v409, 101
        %v426 = vpop.permute.xlu0 %425
        %427 = vrot.lane.b32.xlu0 %v410, 101
        %v428 = vpop.permute.xlu0 %427
        %429 = vrot.lane.b32.xlu0 %v412, 101
        %v430 = vpop.permute.xlu0 %429
        %vm431 = vcmask 826368
        %v432 = vsel %vm431, %v414, %v416
        %v433 = vsel %vm431, %v416, %v418
        %v434 = vsel %vm431, %v418, %v420
        %v435 = vsel %vm431, %v420, %v422
        %v436 = vsel %vm431, %v422, %v424
        %v437 = vsel %vm431, %v424, %v426
        %v438 = vsel %vm431, %v426, %v428
        %v439 = vsel %vm431, %v428, %v430
        %448 = vst [vmem:[#allocation2 + $0x40] sm:$0xf0] %v432
        %449 = vst [vmem:[#allocation2 + $0x48] sm:$0xf0] %v433
        %450 = vst [vmem:[#allocation2 + $0x50] sm:$0xf0] %v434
        %451 = vst [vmem:[#allocation2 + $0x58] sm:$0xf0] %v435
        %452 = vst [vmem:[#allocation2 + $0x60] sm:$0xf0] %v436
        %453 = vst [vmem:[#allocation2 + $0x68] sm:$0xf0] %v437
        %454 = vst [vmem:[#allocation2 + $0x70] sm:$0xf0] %v438
        %455 = vst [vmem:[#allocation2 + $0x78] sm:$0xf0] %v439
        %456 = vst [vmem:[#allocation1] ss:$2 sm:$0xff] %v177
        %s457 = scalar_lea.vmem [#allocation1], 16
        %458 = vst [vmem:[%s457] ss:$2 sm:$0xff] %v178
        %s459 = scalar_lea.vmem [#allocation1], 32
        %460 = vst [vmem:[%s459] ss:$2 sm:$0xff] %v179
        %s461 = scalar_lea.vmem [#allocation1], 48
        %462 = vst [vmem:[%s461] ss:$2 sm:$0xff] %v180
        %v463 = vld.sshfl [vmem:[#allocation1] sm:$0xff pattern:$0x75316420]
        %v464 = vld.sshfl [vmem:[#allocation1 + $0x8] sm:$0xff pattern:$0x75316420]
        %v465 = vld.sshfl [vmem:[#allocation1 + $0x10] sm:$0xff pattern:$0x75316420]
        %v466 = vld.sshfl [vmem:[#allocation1 + $0x18] sm:$0xff pattern:$0x75316420]
        %v467 = vld.sshfl [vmem:[#allocation1 + $0x20] sm:$0xff pattern:$0x75316420]
        %v468 = vld.sshfl [vmem:[#allocation1 + $0x28] sm:$0xff pattern:$0x75316420]
        %v469 = vld.sshfl [vmem:[#allocation1 + $0x30] sm:$0xff pattern:$0x75316420]
        %v470 = vld.sshfl [vmem:[#allocation1 + $0x38] sm:$0xff pattern:$0x75316420]
        %471 = vst [vmem:[#allocation1] ss:$2 sm:$0xff] %v181
        %v472 = vld.sshfl [vmem:[#allocation1] sm:$0xff pattern:$0x75316420]
        %473 = vrot.lane.b32.xlu0 %v463, 100
        %v474 = vpop.permute.xlu0 %473
        %475 = vrot.lane.b32.xlu0 %v464, 100
        %v476 = vpop.permute.xlu0 %475
        %477 = vrot.lane.b32.xlu0 %v465, 100
        %v478 = vpop.permute.xlu0 %477
        %479 = vrot.lane.b32.xlu0 %v466, 100
        %v480 = vpop.permute.xlu0 %479
        %481 = vrot.lane.b32.xlu0 %v467, 100
        %v482 = vpop.permute.xlu0 %481
        %483 = vrot.lane.b32.xlu0 %v468, 100
        %v484 = vpop.permute.xlu0 %483
        %485 = vrot.lane.b32.xlu0 %v469, 100
        %v486 = vpop.permute.xlu0 %485
        %487 = vrot.lane.b32.xlu0 %v470, 100
        %v488 = vpop.permute.xlu0 %487
        %489 = vrot.lane.b32.xlu0 %v472, 100
        %v490 = vpop.permute.xlu0 %489
        %vm491 = vcmask 818176
        %v492 = vsel %vm491, %v474, %v476
        %v493 = vsel %vm491, %v476, %v478
        %v494 = vsel %vm491, %v478, %v480
        %v495 = vsel %vm491, %v480, %v482
        %v496 = vsel %vm491, %v482, %v484
        %v497 = vsel %vm491, %v484, %v486
        %v498 = vsel %vm491, %v486, %v488
        %v499 = vsel %vm491, %v488, %v490
        %508 = vst [vmem:[#allocation2 + $0x80] sm:$0xf] %v492
        %509 = vst [vmem:[#allocation2 + $0x88] sm:$0xf] %v493
        %510 = vst [vmem:[#allocation2 + $0x90] sm:$0xf] %v494
        %511 = vst [vmem:[#allocation2 + $0x98] sm:$0xf] %v495
        %512 = vst [vmem:[#allocation2 + $0xa0] sm:$0xf] %v496
        %513 = vst [vmem:[#allocation2 + $0xa8] sm:$0xf] %v497
        %514 = vst [vmem:[#allocation2 + $0xb0] sm:$0xf] %v498
        %515 = vst [vmem:[#allocation2 + $0xb8] sm:$0xf] %v499
        %s516 = scalar_lea.vmem [#allocation1], 1
        %517 = vst [vmem:[%s516] ss:$2 sm:$0xff] %v177
        %s518 = scalar_lea.vmem [#allocation1], 17
        %519 = vst [vmem:[%s518] ss:$2 sm:$0xff] %v178
        %s520 = scalar_lea.vmem [#allocation1], 33
        %521 = vst [vmem:[%s520] ss:$2 sm:$0xff] %v179
        %s522 = scalar_lea.vmem [#allocation1], 49
        %523 = vst [vmem:[%s522] ss:$2 sm:$0xff] %v180
        %v524 = vld.sshfl [vmem:[#allocation1] sm:$0xff pattern:$0x75316420]
        %v525 = vld.sshfl [vmem:[#allocation1 + $0x8] sm:$0xff pattern:$0x75316420]
        %v526 = vld.sshfl [vmem:[#allocation1 + $0x10] sm:$0xff pattern:$0x75316420]
        %v527 = vld.sshfl [vmem:[#allocation1 + $0x18] sm:$0xff pattern:$0x75316420]
        %v528 = vld.sshfl [vmem:[#allocation1 + $0x20] sm:$0xff pattern:$0x75316420]
        %v529 = vld.sshfl [vmem:[#allocation1 + $0x28] sm:$0xff pattern:$0x75316420]
        %v530 = vld.sshfl [vmem:[#allocation1 + $0x30] sm:$0xff pattern:$0x75316420]
        %v531 = vld.sshfl [vmem:[#allocation1 + $0x38] sm:$0xff pattern:$0x75316420]
        %532 = vst [vmem:[%s516] ss:$2 sm:$0xff] %v181
        %v533 = vld.sshfl [vmem:[#allocation1] sm:$0xff pattern:$0x75316420]
        %534 = vrot.lane.b32.xlu0 %v524, 99
        %v535 = vpop.permute.xlu0 %534
        %536 = vrot.lane.b32.xlu0 %v525, 99
        %v537 = vpop.permute.xlu0 %536
        %538 = vrot.lane.b32.xlu0 %v526, 99
        %v539 = vpop.permute.xlu0 %538
        %540 = vrot.lane.b32.xlu0 %v527, 99
        %v541 = vpop.permute.xlu0 %540
        %542 = vrot.lane.b32.xlu0 %v528, 99
        %v543 = vpop.permute.xlu0 %542
        %544 = vrot.lane.b32.xlu0 %v529, 99
        %v545 = vpop.permute.xlu0 %544
        %546 = vrot.lane.b32.xlu0 %v530, 99
        %v547 = vpop.permute.xlu0 %546
        %548 = vrot.lane.b32.xlu0 %v531, 99
        %v549 = vpop.permute.xlu0 %548
        %550 = vrot.lane.b32.xlu0 %v533, 99
        %v551 = vpop.permute.xlu0 %550
        %vm552 = vcmask 809984
        %v553 = vsel %vm552, %v535, %v537
        %v554 = vsel %vm552, %v537, %v539
        %v555 = vsel %vm552, %v539, %v541
        %v556 = vsel %vm552, %v541, %v543
        %v557 = vsel %vm552, %v543, %v545
        %v558 = vsel %vm552, %v545, %v547
        %v559 = vsel %vm552, %v547, %v549
        %v560 = vsel %vm552, %v549, %v551
        %569 = vst [vmem:[#allocation2 + $0x80] sm:$0xf0] %v553
        %570 = vst [vmem:[#allocation2 + $0x88] sm:$0xf0] %v554
        %571 = vst [vmem:[#allocation2 + $0x90] sm:$0xf0] %v555
        %572 = vst [vmem:[#allocation2 + $0x98] sm:$0xf0] %v556
        %573 = vst [vmem:[#allocation2 + $0xa0] sm:$0xf0] %v557
        %574 = vst [vmem:[#allocation2 + $0xa8] sm:$0xf0] %v558
        %575 = vst [vmem:[#allocation2 + $0xb0] sm:$0xf0] %v559
        %576 = vst [vmem:[#allocation2 + $0xb8] sm:$0xf0] %v560
        %577 = vst [vmem:[#allocation1] ss:$2 sm:$0xff] %v177
        %s578 = scalar_lea.vmem [#allocation1], 16
        %579 = vst [vmem:[%s578] ss:$2 sm:$0xff] %v178
        %s580 = scalar_lea.vmem [#allocation1], 32
        %581 = vst [vmem:[%s580] ss:$2 sm:$0xff] %v179
        %s582 = scalar_lea.vmem [#allocation1], 48
        %583 = vst [vmem:[%s582] ss:$2 sm:$0xff] %v180
        %v584 = vld.sshfl [vmem:[#allocation1] sm:$0xff pattern:$0x75316420]
        %v585 = vld.sshfl [vmem:[#allocation1 + $0x8] sm:$0xff pattern:$0x75316420]
        %v586 = vld.sshfl [vmem:[#allocation1 + $0x10] sm:$0xff pattern:$0x75316420]
        %v587 = vld.sshfl [vmem:[#allocation1 + $0x18] sm:$0xff pattern:$0x75316420]
        %v588 = vld.sshfl [vmem:[#allocation1 + $0x20] sm:$0xff pattern:$0x75316420]
        %v589 = vld.sshfl [vmem:[#allocation1 + $0x28] sm:$0xff pattern:$0x75316420]
        %v590 = vld.sshfl [vmem:[#allocation1 + $0x30] sm:$0xff pattern:$0x75316420]
        %v591 = vld.sshfl [vmem:[#allocation1 + $0x38] sm:$0xff pattern:$0x75316420]
        %592 = vst [vmem:[#allocation1] ss:$2 sm:$0xff] %v181
        %v593 = vld.sshfl [vmem:[#allocation1] sm:$0xff pattern:$0x75316420]
        %594 = vrot.lane.b32.xlu0 %v584, 91
        %v595 = vpop.permute.xlu0 %594
        %596 = vrot.lane.b32.xlu0 %v585, 91
        %v597 = vpop.permute.xlu0 %596
        %598 = vrot.lane.b32.xlu0 %v586, 91
        %v599 = vpop.permute.xlu0 %598
        %600 = vrot.lane.b32.xlu0 %v587, 91
        %v601 = vpop.permute.xlu0 %600
        %602 = vrot.lane.b32.xlu0 %v588, 91
        %v603 = vpop.permute.xlu0 %602
        %604 = vrot.lane.b32.xlu0 %v589, 91
        %v605 = vpop.permute.xlu0 %604
        %606 = vrot.lane.b32.xlu0 %v590, 91
        %v607 = vpop.permute.xlu0 %606
        %608 = vrot.lane.b32.xlu0 %v591, 91
        %v609 = vpop.permute.xlu0 %608
        %610 = vrot.lane.b32.xlu0 %v593, 91
        %v611 = vpop.permute.xlu0 %610
        %vm612 = vcmask 744448
        %v613 = vsel %vm612, %v595, %v597
        %v614 = vsel %vm612, %v597, %v599
        %v615 = vsel %vm612, %v599, %v601
        %v616 = vsel %vm612, %v601, %v603
        %v617 = vsel %vm612, %v603, %v605
        %v618 = vsel %vm612, %v605, %v607
        %v619 = vsel %vm612, %v607, %v609
        %v620 = vsel %vm612, %v609, %v611
        %629 = vst [vmem:[#allocation2 + $0xc0] sm:$0xf] %v613
        %630 = vst [vmem:[#allocation2 + $0xc8] sm:$0xf] %v614
        %631 = vst [vmem:[#allocation2 + $0xd0] sm:$0xf] %v615
        %632 = vst [vmem:[#allocation2 + $0xd8] sm:$0xf] %v616
        %633 = vst [vmem:[#allocation2 + $0xe0] sm:$0xf] %v617
        %634 = vst [vmem:[#allocation2 + $0xe8] sm:$0xf] %v618
        %635 = vst [vmem:[#allocation2 + $0xf0] sm:$0xf] %v619
        %636 = vst [vmem:[#allocation2 + $0xf8] sm:$0xf] %v620
        %s637 = scalar_lea.vmem [#allocation1], 1
        %638 = vst [vmem:[%s637] ss:$2 sm:$0xff] %v177
        %s639 = scalar_lea.vmem [#allocation1], 17
        %640 = vst [vmem:[%s639] ss:$2 sm:$0xff] %v178
        %s641 = scalar_lea.vmem [#allocation1], 33
        %642 = vst [vmem:[%s641] ss:$2 sm:$0xff] %v179
        %s643 = scalar_lea.vmem [#allocation1], 49
        %644 = vst [vmem:[%s643] ss:$2 sm:$0xff] %v180
        %v645 = vld.sshfl [vmem:[#allocation1] sm:$0xff pattern:$0x75316420]
        %v646 = vld.sshfl [vmem:[#allocation1 + $0x8] sm:$0xff pattern:$0x75316420]
        %v647 = vld.sshfl [vmem:[#allocation1 + $0x10] sm:$0xff pattern:$0x75316420]
        %v648 = vld.sshfl [vmem:[#allocation1 + $0x18] sm:$0xff pattern:$0x75316420]
        %v649 = vld.sshfl [vmem:[#allocation1 + $0x20] sm:$0xff pattern:$0x75316420]
        %v650 = vld.sshfl [vmem:[#allocation1 + $0x28] sm:$0xff pattern:$0x75316420]
        %v651 = vld.sshfl [vmem:[#allocation1 + $0x30] sm:$0xff pattern:$0x75316420]
        %v652 = vld.sshfl [vmem:[#allocation1 + $0x38] sm:$0xff pattern:$0x75316420]
        %653 = vst [vmem:[%s637] ss:$2 sm:$0xff] %v181
        %v654 = vld.sshfl [vmem:[#allocation1] sm:$0xff pattern:$0x75316420]
        %655 = vrot.lane.b32.xlu0 %v645, 90
        %v656 = vpop.permute.xlu0 %655
        %657 = vrot.lane.b32.xlu0 %v646, 90
        %v658 = vpop.permute.xlu0 %657
        %659 = vrot.lane.b32.xlu0 %v647, 90
        %v660 = vpop.permute.xlu0 %659
        %661 = vrot.lane.b32.xlu0 %v648, 90
        %v662 = vpop.permute.xlu0 %661
        %663 = vrot.lane.b32.xlu0 %v649, 90
        %v664 = vpop.permute.xlu0 %663
        %665 = vrot.lane.b32.xlu0 %v650, 90
        %v666 = vpop.permute.xlu0 %665
        %667 = vrot.lane.b32.xlu0 %v651, 90
        %v668 = vpop.permute.xlu0 %667
        %669 = vrot.lane.b32.xlu0 %v652, 90
        %v670 = vpop.permute.xlu0 %669
        %671 = vrot.lane.b32.xlu0 %v654, 90
        %v672 = vpop.permute.xlu0 %671
        %vm673 = vcmask 736256
        %v674 = vsel %vm673, %v656, %v658
        %v675 = vsel %vm673, %v658, %v660
        %v676 = vsel %vm673, %v660, %v662
        %v677 = vsel %vm673, %v662, %v664
        %v678 = vsel %vm673, %v664, %v666
        %v679 = vsel %vm673, %v666, %v668
        %v680 = vsel %vm673, %v668, %v670
        %v681 = vsel %vm673, %v670, %v672
        %690 = vst [vmem:[#allocation2 + $0xc0] sm:$0xf0] %v674
        %691 = vst [vmem:[#allocation2 + $0xc8] sm:$0xf0] %v675
        %692 = vst [vmem:[#allocation2 + $0xd0] sm:$0xf0] %v676
        %693 = vst [vmem:[#allocation2 + $0xd8] sm:$0xf0] %v677
        %694 = vst [vmem:[#allocation2 + $0xe0] sm:$0xf0] %v678
        %695 = vst [vmem:[#allocation2 + $0xe8] sm:$0xf0] %v679
        %696 = vst [vmem:[#allocation2 + $0xf0] sm:$0xf0] %v680
        %697 = vst [vmem:[#allocation2 + $0xf8] sm:$0xf0] %v681
        %698 = vst [vmem:[#allocation1] ss:$2 sm:$0xff] %v177
        %s699 = scalar_lea.vmem [#allocation1], 16
        %700 = vst [vmem:[%s699] ss:$2 sm:$0xff] %v178
        %s701 = scalar_lea.vmem [#allocation1], 32
        %702 = vst [vmem:[%s701] ss:$2 sm:$0xff] %v179
        %s703 = scalar_lea.vmem [#allocation1], 48
        %704 = vst [vmem:[%s703] ss:$2 sm:$0xff] %v180
        %v705 = vld.sshfl [vmem:[#allocation1] sm:$0xff pattern:$0x75316420]
        %v706 = vld.sshfl [vmem:[#allocation1 + $0x8] sm:$0xff pattern:$0x75316420]
        %v707 = vld.sshfl [vmem:[#allocation1 + $0x10] sm:$0xff pattern:$0x75316420]
        %v708 = vld.sshfl [vmem:[#allocation1 + $0x18] sm:$0xff pattern:$0x75316420]
        %v709 = vld.sshfl [vmem:[#allocation1 + $0x20] sm:$0xff pattern:$0x75316420]
        %v710 = vld.sshfl [vmem:[#allocation1 + $0x28] sm:$0xff pattern:$0x75316420]
        %v711 = vld.sshfl [vmem:[#allocation1 + $0x30] sm:$0xff pattern:$0x75316420]
        %v712 = vld.sshfl [vmem:[#allocation1 + $0x38] sm:$0xff pattern:$0x75316420]
        %713 = vst [vmem:[#allocation1] ss:$2 sm:$0xff] %v181
        %v714 = vld.sshfl [vmem:[#allocation1] sm:$0xff pattern:$0x75316420]
        %715 = vrot.lane.b32.xlu0 %v705, 89
        %v716 = vpop.permute.xlu0 %715
        %717 = vrot.lane.b32.xlu0 %v706, 89
        %v718 = vpop.permute.xlu0 %717
        %719 = vrot.lane.b32.xlu0 %v707, 89
        %v720 = vpop.permute.xlu0 %719
        %721 = vrot.lane.b32.xlu0 %v708, 89
        %v722 = vpop.permute.xlu0 %721
        %723 = vrot.lane.b32.xlu0 %v709, 89
        %v724 = vpop.permute.xlu0 %723
        %725 = vrot.lane.b32.xlu0 %v710, 89
        %v726 = vpop.permute.xlu0 %725
        %727 = vrot.lane.b32.xlu0 %v711, 89
        %v728 = vpop.permute.xlu0 %727
        %729 = vrot.lane.b32.xlu0 %v712, 89
        %v730 = vpop.permute.xlu0 %729
        %731 = vrot.lane.b32.xlu0 %v714, 89
        %v732 = vpop.permute.xlu0 %731
        %vm733 = vcmask 728064
        %v734 = vsel %vm733, %v716, %v718
        %v735 = vsel %vm733, %v718, %v720
        %v736 = vsel %vm733, %v720, %v722
        %v737 = vsel %vm733, %v722, %v724
        %v738 = vsel %vm733, %v724, %v726
        %v739 = vsel %vm733, %v726, %v728
        %v740 = vsel %vm733, %v728, %v730
        %v741 = vsel %vm733, %v730, %v732
        %750 = vst [vmem:[#allocation2 + $0x100] sm:$0xf] %v734
        %751 = vst [vmem:[#allocation2 + $0x108] sm:$0xf] %v735
        %752 = vst [vmem:[#allocation2 + $0x110] sm:$0xf] %v736
        %753 = vst [vmem:[#allocation2 + $0x118] sm:$0xf] %v737
        %754 = vst [vmem:[#allocation2 + $0x120] sm:$0xf] %v738
        %755 = vst [vmem:[#allocation2 + $0x128] sm:$0xf] %v739
        %756 = vst [vmem:[#allocation2 + $0x130] sm:$0xf] %v740
        %757 = vst [vmem:[#allocation2 + $0x138] sm:$0xf] %v741
        %s758 = scalar_lea.vmem [#allocation1], 1
        %759 = vst [vmem:[%s758] ss:$2 sm:$0xff] %v177
        %s760 = scalar_lea.vmem [#allocation1], 17
        %761 = vst [vmem:[%s760] ss:$2 sm:$0xff] %v178
        %s762 = scalar_lea.vmem [#allocation1], 33
        %763 = vst [vmem:[%s762] ss:$2 sm:$0xff] %v179
        %s764 = scalar_lea.vmem [#allocation1], 49
        %765 = vst [vmem:[%s764] ss:$2 sm:$0xff] %v180
        %v766 = vld.sshfl [vmem:[#allocation1] sm:$0xff pattern:$0x75316420]
        %v767 = vld.sshfl [vmem:[#allocation1 + $0x8] sm:$0xff pattern:$0x75316420]
        %v768 = vld.sshfl [vmem:[#allocation1 + $0x10] sm:$0xff pattern:$0x75316420]
        %v769 = vld.sshfl [vmem:[#allocation1 + $0x18] sm:$0xff pattern:$0x75316420]
        %v770 = vld.sshfl [vmem:[#allocation1 + $0x20] sm:$0xff pattern:$0x75316420]
        %v771 = vld.sshfl [vmem:[#allocation1 + $0x28] sm:$0xff pattern:$0x75316420]
        %v772 = vld.sshfl [vmem:[#allocation1 + $0x30] sm:$0xff pattern:$0x75316420]
        %v773 = vld.sshfl [vmem:[#allocation1 + $0x38] sm:$0xff pattern:$0x75316420]
        %774 = vst [vmem:[%s758] ss:$2 sm:$0xff] %v181
        %v775 = vld.sshfl [vmem:[#allocation1] sm:$0xff pattern:$0x75316420]
        %776 = vrot.lane.b32.xlu0 %v766, 11
        %v777 = vpop.permute.xlu0 %776
        %778 = vrot.lane.b32.xlu0 %v767, 11
        %v779 = vpop.permute.xlu0 %778
        %780 = vrot.lane.b32.xlu0 %v768, 11
        %v781 = vpop.permute.xlu0 %780
        %782 = vrot.lane.b32.xlu0 %v769, 11
        %v783 = vpop.permute.xlu0 %782
        %784 = vrot.lane.b32.xlu0 %v770, 11
        %v785 = vpop.permute.xlu0 %784
        %786 = vrot.lane.b32.xlu0 %v771, 11
        %v787 = vpop.permute.xlu0 %786
        %788 = vrot.lane.b32.xlu0 %v772, 11
        %v789 = vpop.permute.xlu0 %788
        %790 = vrot.lane.b32.xlu0 %v773, 11
        %v791 = vpop.permute.xlu0 %790
        %792 = vrot.lane.b32.xlu0 %v775, 11
        %v793 = vpop.permute.xlu0 %792
        %vm794 = vcmask 89088
        %v795 = vsel %vm794, %v777, %v779
        %v796 = vsel %vm794, %v779, %v781
        %v797 = vsel %vm794, %v781, %v783
        %v798 = vsel %vm794, %v783, %v785
        %v799 = vsel %vm794, %v785, %v787
        %v800 = vsel %vm794, %v787, %v789
        %v801 = vsel %vm794, %v789, %v791
        %v802 = vsel %vm794, %v791, %v793
        %811 = vst [vmem:[#allocation2 + $0x100] sm:$0xf0] %v795
        %812 = vst [vmem:[#allocation2 + $0x108] sm:$0xf0] %v796
        %813 = vst [vmem:[#allocation2 + $0x110] sm:$0xf0] %v797
        %814 = vst [vmem:[#allocation2 + $0x118] sm:$0xf0] %v798
        %815 = vst [vmem:[#allocation2 + $0x120] sm:$0xf0] %v799
        %816 = vst [vmem:[#allocation2 + $0x128] sm:$0xf0] %v800
        %817 = vst [vmem:[#allocation2 + $0x130] sm:$0xf0] %v801
        %818 = vst [vmem:[#allocation2 + $0x138] sm:$0xf0] %v802
        %819 = vst [vmem:[#allocation1] ss:$2 sm:$0xff] %v177
        %s820 = scalar_lea.vmem [#allocation1], 16
        %821 = vst [vmem:[%s820] ss:$2 sm:$0xff] %v178
        %s822 = scalar_lea.vmem [#allocation1], 32
        %823 = vst [vmem:[%s822] ss:$2 sm:$0xff] %v179
        %s824 = scalar_lea.vmem [#allocation1], 48
        %825 = vst [vmem:[%s824] ss:$2 sm:$0xff] %v180
        %v826 = vld.sshfl [vmem:[#allocation1] sm:$0xff pattern:$0x75316420]
        %v827 = vld.sshfl [vmem:[#allocation1 + $0x8] sm:$0xff pattern:$0x75316420]
        %v828 = vld.sshfl [vmem:[#allocation1 + $0x10] sm:$0xff pattern:$0x75316420]
        %v829 = vld.sshfl [vmem:[#allocation1 + $0x18] sm:$0xff pattern:$0x75316420]
        %v830 = vld.sshfl [vmem:[#allocation1 + $0x20] sm:$0xff pattern:$0x75316420]
        %v831 = vld.sshfl [vmem:[#allocation1 + $0x28] sm:$0xff pattern:$0x75316420]
        %v832 = vld.sshfl [vmem:[#allocation1 + $0x30] sm:$0xff pattern:$0x75316420]
        %v833 = vld.sshfl [vmem:[#allocation1 + $0x38] sm:$0xff pattern:$0x75316420]
        %834 = vst [vmem:[#allocation1] ss:$2 sm:$0xff] %v181
        %v835 = vld.sshfl [vmem:[#allocation1] sm:$0xff pattern:$0x75316420]
        %836 = vrot.lane.b32.xlu0 %v826, 10
        %v837 = vpop.permute.xlu0 %836
        %838 = vrot.lane.b32.xlu0 %v827, 10
        %v839 = vpop.permute.xlu0 %838
        %840 = vrot.lane.b32.xlu0 %v828, 10
        %v841 = vpop.permute.xlu0 %840
        %842 = vrot.lane.b32.xlu0 %v829, 10
        %v843 = vpop.permute.xlu0 %842
        %844 = vrot.lane.b32.xlu0 %v830, 10
        %v845 = vpop.permute.xlu0 %844
        %846 = vrot.lane.b32.xlu0 %v831, 10
        %v847 = vpop.permute.xlu0 %846
        %848 = vrot.lane.b32.xlu0 %v832, 10
        %v849 = vpop.permute.xlu0 %848
        %850 = vrot.lane.b32.xlu0 %v833, 10
        %v851 = vpop.permute.xlu0 %850
        %852 = vrot.lane.b32.xlu0 %v835, 10
        %v853 = vpop.permute.xlu0 %852
        %vm854 = vcmask 80896
        %v855 = vsel %vm854, %v837, %v839
        %v856 = vsel %vm854, %v839, %v841
        %v857 = vsel %vm854, %v841, %v843
        %v858 = vsel %vm854, %v843, %v845
        %v859 = vsel %vm854, %v845, %v847
        %v860 = vsel %vm854, %v847, %v849
        %v861 = vsel %vm854, %v849, %v851
        %v862 = vsel %vm854, %v851, %v853
        %871 = vst [vmem:[#allocation2 + $0x140] sm:$0xf] %v855
        %872 = vst [vmem:[#allocation2 + $0x148] sm:$0xf] %v856
        %873 = vst [vmem:[#allocation2 + $0x150] sm:$0xf] %v857
        %874 = vst [vmem:[#allocation2 + $0x158] sm:$0xf] %v858
        %875 = vst [vmem:[#allocation2 + $0x160] sm:$0xf] %v859
        %876 = vst [vmem:[#allocation2 + $0x168] sm:$0xf] %v860
        %877 = vst [vmem:[#allocation2 + $0x170] sm:$0xf] %v861
        %878 = vst [vmem:[#allocation2 + $0x178] sm:$0xf] %v862
        %s879 = scalar_lea.vmem [#allocation1], 1
        %880 = vst [vmem:[%s879] ss:$2 sm:$0xff] %v177
        %s881 = scalar_lea.vmem [#allocation1], 17
        %882 = vst [vmem:[%s881] ss:$2 sm:$0xff] %v178
        %s883 = scalar_lea.vmem [#allocation1], 33
        %884 = vst [vmem:[%s883] ss:$2 sm:$0xff] %v179
        %s885 = scalar_lea.vmem [#allocation1], 49
        %886 = vst [vmem:[%s885] ss:$2 sm:$0xff] %v180
        %v887 = vld.sshfl [vmem:[#allocation1] sm:$0xff pattern:$0x75316420]
        %v888 = vld.sshfl [vmem:[#allocation1 + $0x8] sm:$0xff pattern:$0x75316420]
        %v889 = vld.sshfl [vmem:[#allocation1 + $0x10] sm:$0xff pattern:$0x75316420]
        %v890 = vld.sshfl [vmem:[#allocation1 + $0x18] sm:$0xff pattern:$0x75316420]
        %v891 = vld.sshfl [vmem:[#allocation1 + $0x20] sm:$0xff pattern:$0x75316420]
        %v892 = vld.sshfl [vmem:[#allocation1 + $0x28] sm:$0xff pattern:$0x75316420]
        %v893 = vld.sshfl [vmem:[#allocation1 + $0x30] sm:$0xff pattern:$0x75316420]
        %v894 = vld.sshfl [vmem:[#allocation1 + $0x38] sm:$0xff pattern:$0x75316420]
        %895 = vst [vmem:[%s879] ss:$2 sm:$0xff] %v181
        %v896 = vld.sshfl [vmem:[#allocation1] sm:$0xff pattern:$0x75316420]
        %897 = vrot.lane.b32.xlu0 %v887, 9
        %v898 = vpop.permute.xlu0 %897
        %899 = vrot.lane.b32.xlu0 %v888, 9
        %v900 = vpop.permute.xlu0 %899
        %901 = vrot.lane.b32.xlu0 %v889, 9
        %v902 = vpop.permute.xlu0 %901
        %903 = vrot.lane.b32.xlu0 %v890, 9
        %v904 = vpop.permute.xlu0 %903
        %905 = vrot.lane.b32.xlu0 %v891, 9
        %v906 = vpop.permute.xlu0 %905
        %907 = vrot.lane.b32.xlu0 %v892, 9
        %v908 = vpop.permute.xlu0 %907
        %909 = vrot.lane.b32.xlu0 %v893, 9
        %v910 = vpop.permute.xlu0 %909
        %911 = vrot.lane.b32.xlu0 %v894, 9
        %v912 = vpop.permute.xlu0 %911
        %913 = vrot.lane.b32.xlu0 %v896, 9
        %v914 = vpop.permute.xlu0 %913
        %vm915 = vcmask 72704
        %v916 = vsel %vm915, %v898, %v900
        %v917 = vsel %vm915, %v900, %v902
        %v918 = vsel %vm915, %v902, %v904
        %v919 = vsel %vm915, %v904, %v906
        %v920 = vsel %vm915, %v906, %v908
        %v921 = vsel %vm915, %v908, %v910
        %v922 = vsel %vm915, %v910, %v912
        %v923 = vsel %vm915, %v912, %v914
        %932 = vst [vmem:[#allocation2 + $0x140] sm:$0xf0] %v916
        %933 = vst [vmem:[#allocation2 + $0x148] sm:$0xf0] %v917
        %934 = vst [vmem:[#allocation2 + $0x150] sm:$0xf0] %v918
        %935 = vst [vmem:[#allocation2 + $0x158] sm:$0xf0] %v919
        %936 = vst [vmem:[#allocation2 + $0x160] sm:$0xf0] %v920
        %937 = vst [vmem:[#allocation2 + $0x168] sm:$0xf0] %v921
        %938 = vst [vmem:[#allocation2 + $0x170] sm:$0xf0] %v922
        %939 = vst [vmem:[#allocation2 + $0x178] sm:$0xf0] %v923
        %940 = vst [vmem:[#allocation1] ss:$2 sm:$0xff] %v177
        %s941 = scalar_lea.vmem [#allocation1], 16
        %942 = vst [vmem:[%s941] ss:$2 sm:$0xff] %v178
        %s943 = scalar_lea.vmem [#allocation1], 32
        %944 = vst [vmem:[%s943] ss:$2 sm:$0xff] %v179
        %s945 = scalar_lea.vmem [#allocation1], 48
        %946 = vst [vmem:[%s945] ss:$2 sm:$0xff] %v180
        %v947 = vld.sshfl [vmem:[#allocation1] sm:$0xff pattern:$0x75316420]
        %v948 = vld.sshfl [vmem:[#allocation1 + $0x8] sm:$0xff pattern:$0x75316420]
        %v949 = vld.sshfl [vmem:[#allocation1 + $0x10] sm:$0xff pattern:$0x75316420]
        %v950 = vld.sshfl [vmem:[#allocation1 + $0x18] sm:$0xff pattern:$0x75316420]
        %v951 = vld.sshfl [vmem:[#allocation1 + $0x20] sm:$0xff pattern:$0x75316420]
        %v952 = vld.sshfl [vmem:[#allocation1 + $0x28] sm:$0xff pattern:$0x75316420]
        %v953 = vld.sshfl [vmem:[#allocation1 + $0x30] sm:$0xff pattern:$0x75316420]
        %v954 = vld.sshfl [vmem:[#allocation1 + $0x38] sm:$0xff pattern:$0x75316420]
        %955 = vst [vmem:[#allocation1] ss:$2 sm:$0xff] %v181
        %v956 = vld.sshfl [vmem:[#allocation1] sm:$0xff pattern:$0x75316420]
        %957 = vrot.lane.b32.xlu0 %v947, 1
        %v958 = vpop.permute.xlu0 %957
        %959 = vrot.lane.b32.xlu0 %v948, 1
        %v960 = vpop.permute.xlu0 %959
        %961 = vrot.lane.b32.xlu0 %v949, 1
        %v962 = vpop.permute.xlu0 %961
        %963 = vrot.lane.b32.xlu0 %v950, 1
        %v964 = vpop.permute.xlu0 %963
        %965 = vrot.lane.b32.xlu0 %v951, 1
        %v966 = vpop.permute.xlu0 %965
        %967 = vrot.lane.b32.xlu0 %v952, 1
        %v968 = vpop.permute.xlu0 %967
        %969 = vrot.lane.b32.xlu0 %v953, 1
        %v970 = vpop.permute.xlu0 %969
        %971 = vrot.lane.b32.xlu0 %v954, 1
        %v972 = vpop.permute.xlu0 %971
        %973 = vrot.lane.b32.xlu0 %v956, 1
        %v974 = vpop.permute.xlu0 %973
        %vm975 = vcmask 7168
        %v976 = vsel %vm975, %v958, %v960
        %v977 = vsel %vm975, %v960, %v962
        %v978 = vsel %vm975, %v962, %v964
        %v979 = vsel %vm975, %v964, %v966
        %v980 = vsel %vm975, %v966, %v968
        %v981 = vsel %vm975, %v968, %v970
        %v982 = vsel %vm975, %v970, %v972
        %v983 = vsel %vm975, %v972, %v974
        %992 = vst [vmem:[#allocation2 + $0x180] sm:$0xf] %v976
        %993 = vst [vmem:[#allocation2 + $0x188] sm:$0xf] %v977
        %994 = vst [vmem:[#allocation2 + $0x190] sm:$0xf] %v978
        %995 = vst [vmem:[#allocation2 + $0x198] sm:$0xf] %v979
        %996 = vst [vmem:[#allocation2 + $0x1a0] sm:$0xf] %v980
        %997 = vst [vmem:[#allocation2 + $0x1a8] sm:$0xf] %v981
        %998 = vst [vmem:[#allocation2 + $0x1b0] sm:$0xf] %v982
        %999 = vst [vmem:[#allocation2 + $0x1b8] sm:$0xf] %v983
        %s1000 = scalar_lea.vmem [#allocation1], 1
        %1001 = vst [vmem:[%s1000] ss:$2 sm:$0xff] %v177
        %s1002 = scalar_lea.vmem [#allocation1], 17
        %1003 = vst [vmem:[%s1002] ss:$2 sm:$0xff] %v178
        %s1004 = scalar_lea.vmem [#allocation1], 33
        %1005 = vst [vmem:[%s1004] ss:$2 sm:$0xff] %v179
        %s1006 = scalar_lea.vmem [#allocation1], 49
        %1007 = vst [vmem:[%s1006] ss:$2 sm:$0xff] %v180
        %v1008 = vld.sshfl [vmem:[#allocation1 + $0x8] sm:$0xff pattern:$0x75316420]
        %v1009 = vld.sshfl [vmem:[#allocation1 + $0x10] sm:$0xff pattern:$0x75316420]
        %v1010 = vld.sshfl [vmem:[#allocation1 + $0x18] sm:$0xff pattern:$0x75316420]
        %v1011 = vld.sshfl [vmem:[#allocation1 + $0x20] sm:$0xff pattern:$0x75316420]
        %v1012 = vld.sshfl [vmem:[#allocation1 + $0x28] sm:$0xff pattern:$0x75316420]
        %v1013 = vld.sshfl [vmem:[#allocation1 + $0x30] sm:$0xff pattern:$0x75316420]
        %v1014 = vld.sshfl [vmem:[#allocation1 + $0x38] sm:$0xff pattern:$0x75316420]
        %1015 = vst [vmem:[%s1000] ss:$2 sm:$0xff] %v181
        %v1016 = vld.sshfl [vmem:[#allocation1] sm:$0xff pattern:$0x75316420]
        %1025 = vst [vmem:[#allocation2 + $0x180] sm:$0xf0] %v1008
        %1026 = vst [vmem:[#allocation2 + $0x188] sm:$0xf0] %v1009
        %1027 = vst [vmem:[#allocation2 + $0x190] sm:$0xf0] %v1010
        %1028 = vst [vmem:[#allocation2 + $0x198] sm:$0xf0] %v1011
        %1029 = vst [vmem:[#allocation2 + $0x1a0] sm:$0xf0] %v1012
        %1030 = vst [vmem:[#allocation2 + $0x1a8] sm:$0xf0] %v1013
        %1031 = vst [vmem:[#allocation2 + $0x1b0] sm:$0xf0] %v1014
        %1032 = vst [vmem:[#allocation2 + $0x1b8] sm:$0xf0] %v1016
        %1033 = vst [vmem:[#allocation1] ss:$2 sm:$0xff] %v177
        %s1034 = scalar_lea.vmem [#allocation1], 16
        %1035 = vst [vmem:[%s1034] ss:$2 sm:$0xff] %v178
        %s1036 = scalar_lea.vmem [#allocation1], 32
        %1037 = vst [vmem:[%s1036] ss:$2 sm:$0xff] %v179
        %s1038 = scalar_lea.vmem [#allocation1], 48
        %1039 = vst [vmem:[%s1038] ss:$2 sm:$0xff] %v180
        %v1040 = vld.sshfl [vmem:[#allocation1 + $0x8] sm:$0xff pattern:$0x75316420]
        %v1041 = vld.sshfl [vmem:[#allocation1 + $0x10] sm:$0xff pattern:$0x75316420]
        %v1042 = vld.sshfl [vmem:[#allocation1 + $0x18] sm:$0xff pattern:$0x75316420]
        %v1043 = vld.sshfl [vmem:[#allocation1 + $0x20] sm:$0xff pattern:$0x75316420]
        %v1044 = vld.sshfl [vmem:[#allocation1 + $0x28] sm:$0xff pattern:$0x75316420]
        %v1045 = vld.sshfl [vmem:[#allocation1 + $0x30] sm:$0xff pattern:$0x75316420]
        %v1046 = vld.sshfl [vmem:[#allocation1 + $0x38] sm:$0xff pattern:$0x75316420]
        %1047 = vst [vmem:[#allocation1] ss:$2 sm:$0xff] %v181
        %v1048 = vld.sshfl [vmem:[#allocation1] sm:$0xff pattern:$0x75316420]
        %v1049 = vld.sshfl [vmem:[#allocation1 + $0x8] sm:$0xff pattern:$0x75316420]
        %1050 = vrot.lane.b32.xlu0 %v1040, 127
        %v1051 = vpop.permute.xlu0 %1050
        %1052 = vrot.lane.b32.xlu0 %v1041, 127
        %v1053 = vpop.permute.xlu0 %1052
        %1054 = vrot.lane.b32.xlu0 %v1042, 127
        %v1055 = vpop.permute.xlu0 %1054
        %1056 = vrot.lane.b32.xlu0 %v1043, 127
        %v1057 = vpop.permute.xlu0 %1056
        %1058 = vrot.lane.b32.xlu0 %v1044, 127
        %v1059 = vpop.permute.xlu0 %1058
        %1060 = vrot.lane.b32.xlu0 %v1045, 127
        %v1061 = vpop.permute.xlu0 %1060
        %1062 = vrot.lane.b32.xlu0 %v1046, 127
        %v1063 = vpop.permute.xlu0 %1062
        %1064 = vrot.lane.b32.xlu0 %v1048, 127
        %v1065 = vpop.permute.xlu0 %1064
        %1066 = vrot.lane.b32.xlu0 %v1049, 127
        %v1067 = vpop.permute.xlu0 %1066
        %vm1068 = vcmask 1039360
        %v1069 = vsel %vm1068, %v1051, %v1053
        %v1070 = vsel %vm1068, %v1053, %v1055
        %v1071 = vsel %vm1068, %v1055, %v1057
        %v1072 = vsel %vm1068, %v1057, %v1059
        %v1073 = vsel %vm1068, %v1059, %v1061
        %v1074 = vsel %vm1068, %v1061, %v1063
        %v1075 = vsel %vm1068, %v1063, %v1065
        %v1076 = vsel %vm1068, %v1065, %v1067
        %1085 = vst [vmem:[#allocation2 + $0x1c0] sm:$0xf] %v1069
        %1086 = vst [vmem:[#allocation2 + $0x1c8] sm:$0xf] %v1070
        %1087 = vst [vmem:[#allocation2 + $0x1d0] sm:$0xf] %v1071
        %1088 = vst [vmem:[#allocation2 + $0x1d8] sm:$0xf] %v1072
        %1089 = vst [vmem:[#allocation2 + $0x1e0] sm:$0xf] %v1073
        %1090 = vst [vmem:[#allocation2 + $0x1e8] sm:$0xf] %v1074
        %1091 = vst [vmem:[#allocation2 + $0x1f0] sm:$0xf] %v1075
        %1092 = vst [vmem:[#allocation2 + $0x1f8] sm:$0xf] %v1076
        %s1093 = scalar_lea.vmem [#allocation1], 1
        %1094 = vst [vmem:[%s1093] ss:$2 sm:$0xff] %v177
        %s1095 = scalar_lea.vmem [#allocation1], 17
        %1096 = vst [vmem:[%s1095] ss:$2 sm:$0xff] %v178
        %s1097 = scalar_lea.vmem [#allocation1], 33
        %1098 = vst [vmem:[%s1097] ss:$2 sm:$0xff] %v179
        %s1099 = scalar_lea.vmem [#allocation1], 49
        %1100 = vst [vmem:[%s1099] ss:$2 sm:$0xff] %v180
        %v1101 = vld.sshfl [vmem:[#allocation1 + $0x8] sm:$0xff pattern:$0x75316420]
        %v1102 = vld.sshfl [vmem:[#allocation1 + $0x10] sm:$0xff pattern:$0x75316420]
        %v1103 = vld.sshfl [vmem:[#allocation1 + $0x18] sm:$0xff pattern:$0x75316420]
        %v1104 = vld.sshfl [vmem:[#allocation1 + $0x20] sm:$0xff pattern:$0x75316420]
        %v1105 = vld.sshfl [vmem:[#allocation1 + $0x28] sm:$0xff pattern:$0x75316420]
        %v1106 = vld.sshfl [vmem:[#allocation1 + $0x30] sm:$0xff pattern:$0x75316420]
        %v1107 = vld.sshfl [vmem:[#allocation1 + $0x38] sm:$0xff pattern:$0x75316420]
        %1108 = vst [vmem:[%s1093] ss:$2 sm:$0xff] %v181
        %v1109 = vld.sshfl [vmem:[#allocation1] sm:$0xff pattern:$0x75316420]
        %v1110 = vld.sshfl [vmem:[#allocation1 + $0x8] sm:$0xff pattern:$0x75316420]
        %1111 = vrot.lane.b32.xlu0 %v1101, 119
        %v1112 = vpop.permute.xlu0 %1111
        %1113 = vrot.lane.b32.xlu0 %v1102, 119
        %v1114 = vpop.permute.xlu0 %1113
        %1115 = vrot.lane.b32.xlu0 %v1103, 119
        %v1116 = vpop.permute.xlu0 %1115
        %1117 = vrot.lane.b32.xlu0 %v1104, 119
        %v1118 = vpop.permute.xlu0 %1117
        %1119 = vrot.lane.b32.xlu0 %v1105, 119
        %v1120 = vpop.permute.xlu0 %1119
        %1121 = vrot.lane.b32.xlu0 %v1106, 119
        %v1122 = vpop.permute.xlu0 %1121
        %1123 = vrot.lane.b32.xlu0 %v1107, 119
        %v1124 = vpop.permute.xlu0 %1123
        %1125 = vrot.lane.b32.xlu0 %v1109, 119
        %v1126 = vpop.permute.xlu0 %1125
        %1127 = vrot.lane.b32.xlu0 %v1110, 119
        %v1128 = vpop.permute.xlu0 %1127
        %vm1129 = vcmask 973824
        %v1130 = vsel %vm1129, %v1112, %v1114
        %v1131 = vsel %vm1129, %v1114, %v1116
        %v1132 = vsel %vm1129, %v1116, %v1118
        %v1133 = vsel %vm1129, %v1118, %v1120
        %v1134 = vsel %vm1129, %v1120, %v1122
        %v1135 = vsel %vm1129, %v1122, %v1124
        %v1136 = vsel %vm1129, %v1124, %v1126
        %v1137 = vsel %vm1129, %v1126, %v1128
        %1146 = vst [vmem:[#allocation2 + $0x1c0] sm:$0xf0] %v1130
        %1147 = vst [vmem:[#allocation2 + $0x1c8] sm:$0xf0] %v1131
        %1148 = vst [vmem:[#allocation2 + $0x1d0] sm:$0xf0] %v1132
        %1149 = vst [vmem:[#allocation2 + $0x1d8] sm:$0xf0] %v1133
        %1150 = vst [vmem:[#allocation2 + $0x1e0] sm:$0xf0] %v1134
        %1151 = vst [vmem:[#allocation2 + $0x1e8] sm:$0xf0] %v1135
        %1152 = vst [vmem:[#allocation2 + $0x1f0] sm:$0xf0] %v1136
        %1153 = vst [vmem:[#allocation2 + $0x1f8] sm:$0xf0] %v1137
        %1154 = vst [vmem:[#allocation1] ss:$2 sm:$0xff] %v177
        %s1155 = scalar_lea.vmem [#allocation1], 16
        %1156 = vst [vmem:[%s1155] ss:$2 sm:$0xff] %v178
        %s1157 = scalar_lea.vmem [#allocation1], 32
        %1158 = vst [vmem:[%s1157] ss:$2 sm:$0xff] %v179
        %s1159 = scalar_lea.vmem [#allocation1], 48
        %1160 = vst [vmem:[%s1159] ss:$2 sm:$0xff] %v180
        %v1161 = vld.sshfl [vmem:[#allocation1 + $0x8] sm:$0xff pattern:$0x75316420]
        %v1162 = vld.sshfl [vmem:[#allocation1 + $0x10] sm:$0xff pattern:$0x75316420]
        %v1163 = vld.sshfl [vmem:[#allocation1 + $0x18] sm:$0xff pattern:$0x75316420]
        %v1164 = vld.sshfl [vmem:[#allocation1 + $0x20] sm:$0xff pattern:$0x75316420]
        %v1165 = vld.sshfl [vmem:[#allocation1 + $0x28] sm:$0xff pattern:$0x75316420]
        %v1166 = vld.sshfl [vmem:[#allocation1 + $0x30] sm:$0xff pattern:$0x75316420]
        %v1167 = vld.sshfl [vmem:[#allocation1 + $0x38] sm:$0xff pattern:$0x75316420]
        %1168 = vst [vmem:[#allocation1] ss:$2 sm:$0xff] %v181
        %v1169 = vld.sshfl [vmem:[#allocation1] sm:$0xff pattern:$0x75316420]
        %v1170 = vld.sshfl [vmem:[#allocation1 + $0x8] sm:$0xff pattern:$0x75316420]
        %1171 = vrot.lane.b32.xlu0 %v1161, 118
        %v1172 = vpop.permute.xlu0 %1171
        %1173 = vrot.lane.b32.xlu0 %v1162, 118
        %v1174 = vpop.permute.xlu0 %1173
        %1175 = vrot.lane.b32.xlu0 %v1163, 118
        %v1176 = vpop.permute.xlu0 %1175
        %1177 = vrot.lane.b32.xlu0 %v1164, 118
        %v1178 = vpop.permute.xlu0 %1177
        %1179 = vrot.lane.b32.xlu0 %v1165, 118
        %v1180 = vpop.permute.xlu0 %1179
        %1181 = vrot.lane.b32.xlu0 %v1166, 118
        %v1182 = vpop.permute.xlu0 %1181
        %1183 = vrot.lane.b32.xlu0 %v1167, 118
        %v1184 = vpop.permute.xlu0 %1183
        %1185 = vrot.lane.b32.xlu0 %v1169, 118
        %v1186 = vpop.permute.xlu0 %1185
        %1187 = vrot.lane.b32.xlu0 %v1170, 118
        %v1188 = vpop.permute.xlu0 %1187
        %vm1189 = vcmask 965632
        %v1190 = vsel %vm1189, %v1172, %v1174
        %v1191 = vsel %vm1189, %v1174, %v1176
        %v1192 = vsel %vm1189, %v1176, %v1178
        %v1193 = vsel %vm1189, %v1178, %v1180
        %v1194 = vsel %vm1189, %v1180, %v1182
        %v1195 = vsel %vm1189, %v1182, %v1184
        %v1196 = vsel %vm1189, %v1184, %v1186
        %v1197 = vsel %vm1189, %v1186, %v1188
        %1206 = vst [vmem:[#allocation2 + $0x200] sm:$0xf] %v1190
        %1207 = vst [vmem:[#allocation2 + $0x208] sm:$0xf] %v1191
        %1208 = vst [vmem:[#allocation2 + $0x210] sm:$0xf] %v1192
        %1209 = vst [vmem:[#allocation2 + $0x218] sm:$0xf] %v1193
        %1210 = vst [vmem:[#allocation2 + $0x220] sm:$0xf] %v1194
        %1211 = vst [vmem:[#allocation2 + $0x228] sm:$0xf] %v1195
        %1212 = vst [vmem:[#allocation2 + $0x230] sm:$0xf] %v1196
        %1213 = vst [vmem:[#allocation2 + $0x238] sm:$0xf] %v1197
        %s1214 = scalar_lea.vmem [#allocation1], 1
        %1215 = vst [vmem:[%s1214] ss:$2 sm:$0xff] %v177
        %s1216 = scalar_lea.vmem [#allocation1], 17
        %1217 = vst [vmem:[%s1216] ss:$2 sm:$0xff] %v178
        %s1218 = scalar_lea.vmem [#allocation1], 33
        %1219 = vst [vmem:[%s1218] ss:$2 sm:$0xff] %v179
        %s1220 = scalar_lea.vmem [#allocation1], 49
        %1221 = vst [vmem:[%s1220] ss:$2 sm:$0xff] %v180
        %v1222 = vld.sshfl [vmem:[#allocation1 + $0x8] sm:$0xff pattern:$0x75316420]
        %v1223 = vld.sshfl [vmem:[#allocation1 + $0x10] sm:$0xff pattern:$0x75316420]
        %v1224 = vld.sshfl [vmem:[#allocation1 + $0x18] sm:$0xff pattern:$0x75316420]
        %v1225 = vld.sshfl [vmem:[#allocation1 + $0x20] sm:$0xff pattern:$0x75316420]
        %v1226 = vld.sshfl [vmem:[#allocation1 + $0x28] sm:$0xff pattern:$0x75316420]
        %v1227 = vld.sshfl [vmem:[#allocation1 + $0x30] sm:$0xff pattern:$0x75316420]
        %v1228 = vld.sshfl [vmem:[#allocation1 + $0x38] sm:$0xff pattern:$0x75316420]
        %1229 = vst [vmem:[%s1214] ss:$2 sm:$0xff] %v181
        %v1230 = vld.sshfl [vmem:[#allocation1] sm:$0xff pattern:$0x75316420]
        %v1231 = vld.sshfl [vmem:[#allocation1 + $0x8] sm:$0xff pattern:$0x75316420]
        %1232 = vrot.lane.b32.xlu0 %v1222, 117
        %v1233 = vpop.permute.xlu0 %1232
        %1234 = vrot.lane.b32.xlu0 %v1223, 117
        %v1235 = vpop.permute.xlu0 %1234
        %1236 = vrot.lane.b32.xlu0 %v1224, 117
        %v1237 = vpop.permute.xlu0 %1236
        %1238 = vrot.lane.b32.xlu0 %v1225, 117
        %v1239 = vpop.permute.xlu0 %1238
        %1240 = vrot.lane.b32.xlu0 %v1226, 117
        %v1241 = vpop.permute.xlu0 %1240
        %1242 = vrot.lane.b32.xlu0 %v1227, 117
        %v1243 = vpop.permute.xlu0 %1242
        %1244 = vrot.lane.b32.xlu0 %v1228, 117
        %v1245 = vpop.permute.xlu0 %1244
        %1246 = vrot.lane.b32.xlu0 %v1230, 117
        %v1247 = vpop.permute.xlu0 %1246
        %1248 = vrot.lane.b32.xlu0 %v1231, 117
        %v1249 = vpop.permute.xlu0 %1248
        %vm1250 = vcmask 957440
        %v1251 = vsel %vm1250, %v1233, %v1235
        %v1252 = vsel %vm1250, %v1235, %v1237
        %v1253 = vsel %vm1250, %v1237, %v1239
        %v1254 = vsel %vm1250, %v1239, %v1241
        %v1255 = vsel %vm1250, %v1241, %v1243
        %v1256 = vsel %vm1250, %v1243, %v1245
        %v1257 = vsel %vm1250, %v1245, %v1247
        %v1258 = vsel %vm1250, %v1247, %v1249
        %1267 = vst [vmem:[#allocation2 + $0x200] sm:$0xf0] %v1251
        %1268 = vst [vmem:[#allocation2 + $0x208] sm:$0xf0] %v1252
        %1269 = vst [vmem:[#allocation2 + $0x210] sm:$0xf0] %v1253
        %1270 = vst [vmem:[#allocation2 + $0x218] sm:$0xf0] %v1254
        %1271 = vst [vmem:[#allocation2 + $0x220] sm:$0xf0] %v1255
        %1272 = vst [vmem:[#allocation2 + $0x228] sm:$0xf0] %v1256
        %1273 = vst [vmem:[#allocation2 + $0x230] sm:$0xf0] %v1257
        %1274 = vst [vmem:[#allocation2 + $0x238] sm:$0xf0] %v1258
        %1275 = vst [vmem:[#allocation1] ss:$2 sm:$0xff] %v177
        %s1276 = scalar_lea.vmem [#allocation1], 16
        %1277 = vst [vmem:[%s1276] ss:$2 sm:$0xff] %v178
        %s1278 = scalar_lea.vmem [#allocation1], 32
        %1279 = vst [vmem:[%s1278] ss:$2 sm:$0xff] %v179
        %s1280 = scalar_lea.vmem [#allocation1], 48
        %1281 = vst [vmem:[%s1280] ss:$2 sm:$0xff] %v180
        %v1282 = vld.sshfl [vmem:[#allocation1 + $0x8] sm:$0xff pattern:$0x75316420]
        %v1283 = vld.sshfl [vmem:[#allocation1 + $0x10] sm:$0xff pattern:$0x75316420]
        %v1284 = vld.sshfl [vmem:[#allocation1 + $0x18] sm:$0xff pattern:$0x75316420]
        %v1285 = vld.sshfl [vmem:[#allocation1 + $0x20] sm:$0xff pattern:$0x75316420]
        %v1286 = vld.sshfl [vmem:[#allocation1 + $0x28] sm:$0xff pattern:$0x75316420]
        %v1287 = vld.sshfl [vmem:[#allocation1 + $0x30] sm:$0xff pattern:$0x75316420]
        %v1288 = vld.sshfl [vmem:[#allocation1 + $0x38] sm:$0xff pattern:$0x75316420]
        %1289 = vst [vmem:[#allocation1] ss:$2 sm:$0xff] %v181
        %v1290 = vld.sshfl [vmem:[#allocation1] sm:$0xff pattern:$0x75316420]
        %v1291 = vld.sshfl [vmem:[#allocation1 + $0x8] sm:$0xff pattern:$0x75316420]
        %1292 = vrot.lane.b32.xlu0 %v1282, 39
        %v1293 = vpop.permute.xlu0 %1292
        %1294 = vrot.lane.b32.xlu0 %v1283, 39
        %v1295 = vpop.permute.xlu0 %1294
        %1296 = vrot.lane.b32.xlu0 %v1284, 39
        %v1297 = vpop.permute.xlu0 %1296
        %1298 = vrot.lane.b32.xlu0 %v1285, 39
        %v1299 = vpop.permute.xlu0 %1298
        %1300 = vrot.lane.b32.xlu0 %v1286, 39
        %v1301 = vpop.permute.xlu0 %1300
        %1302 = vrot.lane.b32.xlu0 %v1287, 39
        %v1303 = vpop.permute.xlu0 %1302
        %1304 = vrot.lane.b32.xlu0 %v1288, 39
        %v1305 = vpop.permute.xlu0 %1304
        %1306 = vrot.lane.b32.xlu0 %v1290, 39
        %v1307 = vpop.permute.xlu0 %1306
        %1308 = vrot.lane.b32.xlu0 %v1291, 39
        %v1309 = vpop.permute.xlu0 %1308
        %vm1310 = vcmask 318464
        %v1311 = vsel %vm1310, %v1293, %v1295
        %v1312 = vsel %vm1310, %v1295, %v1297
        %v1313 = vsel %vm1310, %v1297, %v1299
        %v1314 = vsel %vm1310, %v1299, %v1301
        %v1315 = vsel %vm1310, %v1301, %v1303
        %v1316 = vsel %vm1310, %v1303, %v1305
        %v1317 = vsel %vm1310, %v1305, %v1307
        %v1318 = vsel %vm1310, %v1307, %v1309
        %1327 = vst [vmem:[#allocation2 + $0x240] sm:$0xf] %v1311
        %1328 = vst [vmem:[#allocation2 + $0x248] sm:$0xf] %v1312
        %1329 = vst [vmem:[#allocation2 + $0x250] sm:$0xf] %v1313
        %1330 = vst [vmem:[#allocation2 + $0x258] sm:$0xf] %v1314
        %1331 = vst [vmem:[#allocation2 + $0x260] sm:$0xf] %v1315
        %1332 = vst [vmem:[#allocation2 + $0x268] sm:$0xf] %v1316
        %1333 = vst [vmem:[#allocation2 + $0x270] sm:$0xf] %v1317
        %1334 = vst [vmem:[#allocation2 + $0x278] sm:$0xf] %v1318
        %s1335 = scalar_lea.vmem [#allocation1], 1
        %1336 = vst [vmem:[%s1335] ss:$2 sm:$0xff] %v177
        %s1337 = scalar_lea.vmem [#allocation1], 17
        %1338 = vst [vmem:[%s1337] ss:$2 sm:$0xff] %v178
        %s1339 = scalar_lea.vmem [#allocation1], 33
        %1340 = vst [vmem:[%s1339] ss:$2 sm:$0xff] %v179
        %s1341 = scalar_lea.vmem [#allocation1], 49
        %1342 = vst [vmem:[%s1341] ss:$2 sm:$0xff] %v180
        %v1343 = vld.sshfl [vmem:[#allocation1 + $0x8] sm:$0xff pattern:$0x75316420]
        %v1344 = vld.sshfl [vmem:[#allocation1 + $0x10] sm:$0xff pattern:$0x75316420]
        %v1345 = vld.sshfl [vmem:[#allocation1 + $0x18] sm:$0xff pattern:$0x75316420]
        %v1346 = vld.sshfl [vmem:[#allocation1 + $0x20] sm:$0xff pattern:$0x75316420]
        %v1347 = vld.sshfl [vmem:[#allocation1 + $0x28] sm:$0xff pattern:$0x75316420]
        %v1348 = vld.sshfl [vmem:[#allocation1 + $0x30] sm:$0xff pattern:$0x75316420]
        %v1349 = vld.sshfl [vmem:[#allocation1 + $0x38] sm:$0xff pattern:$0x75316420]
        %1350 = vst [vmem:[%s1335] ss:$2 sm:$0xff] %v181
        %v1351 = vld.sshfl [vmem:[#allocation1] sm:$0xff pattern:$0x75316420]
        %v1352 = vld.sshfl [vmem:[#allocation1 + $0x8] sm:$0xff pattern:$0x75316420]
        %1353 = vrot.lane.b32.xlu0 %v1343, 38
        %v1354 = vpop.permute.xlu0 %1353
        %1355 = vrot.lane.b32.xlu0 %v1344, 38
        %v1356 = vpop.permute.xlu0 %1355
        %1357 = vrot.lane.b32.xlu0 %v1345, 38
        %v1358 = vpop.permute.xlu0 %1357
        %1359 = vrot.lane.b32.xlu0 %v1346, 38
        %v1360 = vpop.permute.xlu0 %1359
        %1361 = vrot.lane.b32.xlu0 %v1347, 38
        %v1362 = vpop.permute.xlu0 %1361
        %1363 = vrot.lane.b32.xlu0 %v1348, 38
        %v1364 = vpop.permute.xlu0 %1363
        %1365 = vrot.lane.b32.xlu0 %v1349, 38
        %v1366 = vpop.permute.xlu0 %1365
        %1367 = vrot.lane.b32.xlu0 %v1351, 38
        %v1368 = vpop.permute.xlu0 %1367
        %1369 = vrot.lane.b32.xlu0 %v1352, 38
        %v1370 = vpop.permute.xlu0 %1369
        %vm1371 = vcmask 310272
        %v1372 = vsel %vm1371, %v1354, %v1356
        %v1373 = vsel %vm1371, %v1356, %v1358
        %v1374 = vsel %vm1371, %v1358, %v1360
        %v1375 = vsel %vm1371, %v1360, %v1362
        %v1376 = vsel %vm1371, %v1362, %v1364
        %v1377 = vsel %vm1371, %v1364, %v1366
        %v1378 = vsel %vm1371, %v1366, %v1368
        %v1379 = vsel %vm1371, %v1368, %v1370
        %1388 = vst [vmem:[#allocation2 + $0x240] sm:$0xf0] %v1372
        %1389 = vst [vmem:[#allocation2 + $0x248] sm:$0xf0] %v1373
        %1390 = vst [vmem:[#allocation2 + $0x250] sm:$0xf0] %v1374
        %1391 = vst [vmem:[#allocation2 + $0x258] sm:$0xf0] %v1375
        %1392 = vst [vmem:[#allocation2 + $0x260] sm:$0xf0] %v1376
        %1393 = vst [vmem:[#allocation2 + $0x268] sm:$0xf0] %v1377
        %1394 = vst [vmem:[#allocation2 + $0x270] sm:$0xf0] %v1378
        %1395 = vst [vmem:[#allocation2 + $0x278] sm:$0xf0] %v1379
        %1396 = vst [vmem:[#allocation1] ss:$2 sm:$0xff] %v177
        %s1397 = scalar_lea.vmem [#allocation1], 16
        %1398 = vst [vmem:[%s1397] ss:$2 sm:$0xff] %v178
        %s1399 = scalar_lea.vmem [#allocation1], 32
        %1400 = vst [vmem:[%s1399] ss:$2 sm:$0xff] %v179
        %s1401 = scalar_lea.vmem [#allocation1], 48
        %1402 = vst [vmem:[%s1401] ss:$2 sm:$0xff] %v180
        %v1403 = vld.sshfl [vmem:[#allocation1 + $0x8] sm:$0xff pattern:$0x75316420]
        %v1404 = vld.sshfl [vmem:[#allocation1 + $0x10] sm:$0xff pattern:$0x75316420]
        %v1405 = vld.sshfl [vmem:[#allocation1 + $0x18] sm:$0xff pattern:$0x75316420]
        %v1406 = vld.sshfl [vmem:[#allocation1 + $0x20] sm:$0xff pattern:$0x75316420]
        %v1407 = vld.sshfl [vmem:[#allocation1 + $0x28] sm:$0xff pattern:$0x75316420]
        %v1408 = vld.sshfl [vmem:[#allocation1 + $0x30] sm:$0xff pattern:$0x75316420]
        %v1409 = vld.sshfl [vmem:[#allocation1 + $0x38] sm:$0xff pattern:$0x75316420]
        %1410 = vst [vmem:[#allocation1] ss:$2 sm:$0xff] %v181
        %v1411 = vld.sshfl [vmem:[#allocation1] sm:$0xff pattern:$0x75316420]
        %v1412 = vld.sshfl [vmem:[#allocation1 + $0x8] sm:$0xff pattern:$0x75316420]
        %1413 = vrot.lane.b32.xlu0 %v1403, 37
        %v1414 = vpop.permute.xlu0 %1413
        %1415 = vrot.lane.b32.xlu0 %v1404, 37
        %v1416 = vpop.permute.xlu0 %1415
        %1417 = vrot.lane.b32.xlu0 %v1405, 37
        %v1418 = vpop.permute.xlu0 %1417
        %1419 = vrot.lane.b32.xlu0 %v1406, 37
        %v1420 = vpop.permute.xlu0 %1419
        %1421 = vrot.lane.b32.xlu0 %v1407, 37
        %v1422 = vpop.permute.xlu0 %1421
        %1423 = vrot.lane.b32.xlu0 %v1408, 37
        %v1424 = vpop.permute.xlu0 %1423
        %1425 = vrot.lane.b32.xlu0 %v1409, 37
        %v1426 = vpop.permute.xlu0 %1425
        %1427 = vrot.lane.b32.xlu0 %v1411, 37
        %v1428 = vpop.permute.xlu0 %1427
        %1429 = vrot.lane.b32.xlu0 %v1412, 37
        %v1430 = vpop.permute.xlu0 %1429
        %vm1431 = vcmask 302080
        %v1432 = vsel %vm1431, %v1414, %v1416
        %v1433 = vsel %vm1431, %v1416, %v1418
        %v1434 = vsel %vm1431, %v1418, %v1420
        %v1435 = vsel %vm1431, %v1420, %v1422
        %v1436 = vsel %vm1431, %v1422, %v1424
        %v1437 = vsel %vm1431, %v1424, %v1426
        %v1438 = vsel %vm1431, %v1426, %v1428
        %v1439 = vsel %vm1431, %v1428, %v1430
        %1448 = vst [vmem:[#allocation2 + $0x280] sm:$0xf] %v1432
        %1449 = vst [vmem:[#allocation2 + $0x288] sm:$0xf] %v1433
        %1450 = vst [vmem:[#allocation2 + $0x290] sm:$0xf] %v1434
        %1451 = vst [vmem:[#allocation2 + $0x298] sm:$0xf] %v1435
        %1452 = vst [vmem:[#allocation2 + $0x2a0] sm:$0xf] %v1436
        %1453 = vst [vmem:[#allocation2 + $0x2a8] sm:$0xf] %v1437
        %1454 = vst [vmem:[#allocation2 + $0x2b0] sm:$0xf] %v1438
        %1455 = vst [vmem:[#allocation2 + $0x2b8] sm:$0xf] %v1439
        %s1456 = scalar_lea.vmem [#allocation1], 1
        %1457 = vst [vmem:[%s1456] ss:$2 sm:$0xff] %v177
        %s1458 = scalar_lea.vmem [#allocation1], 17
        %1459 = vst [vmem:[%s1458] ss:$2 sm:$0xff] %v178
        %s1460 = scalar_lea.vmem [#allocation1], 33
        %1461 = vst [vmem:[%s1460] ss:$2 sm:$0xff] %v179
        %s1462 = scalar_lea.vmem [#allocation1], 49
        %1463 = vst [vmem:[%s1462] ss:$2 sm:$0xff] %v180
        %v1464 = vld.sshfl [vmem:[#allocation1 + $0x8] sm:$0xff pattern:$0x75316420]
        %v1465 = vld.sshfl [vmem:[#allocation1 + $0x10] sm:$0xff pattern:$0x75316420]
        %v1466 = vld.sshfl [vmem:[#allocation1 + $0x18] sm:$0xff pattern:$0x75316420]
        %v1467 = vld.sshfl [vmem:[#allocation1 + $0x20] sm:$0xff pattern:$0x75316420]
        %v1468 = vld.sshfl [vmem:[#allocation1 + $0x28] sm:$0xff pattern:$0x75316420]
        %v1469 = vld.sshfl [vmem:[#allocation1 + $0x30] sm:$0xff pattern:$0x75316420]
        %v1470 = vld.sshfl [vmem:[#allocation1 + $0x38] sm:$0xff pattern:$0x75316420]
        %1471 = vst [vmem:[%s1456] ss:$2 sm:$0xff] %v181
        %v1472 = vld.sshfl [vmem:[#allocation1] sm:$0xff pattern:$0x75316420]
        %v1473 = vld.sshfl [vmem:[#allocation1 + $0x8] sm:$0xff pattern:$0x75316420]
        %1474 = vrot.lane.b32.xlu0 %v1464, 29
        %v1475 = vpop.permute.xlu0 %1474
        %1476 = vrot.lane.b32.xlu0 %v1465, 29
        %v1477 = vpop.permute.xlu0 %1476
        %1478 = vrot.lane.b32.xlu0 %v1466, 29
        %v1479 = vpop.permute.xlu0 %1478
        %1480 = vrot.lane.b32.xlu0 %v1467, 29
        %v1481 = vpop.permute.xlu0 %1480
        %1482 = vrot.lane.b32.xlu0 %v1468, 29
        %v1483 = vpop.permute.xlu0 %1482
        %1484 = vrot.lane.b32.xlu0 %v1469, 29
        %v1485 = vpop.permute.xlu0 %1484
        %1486 = vrot.lane.b32.xlu0 %v1470, 29
        %v1487 = vpop.permute.xlu0 %1486
        %1488 = vrot.lane.b32.xlu0 %v1472, 29
        %v1489 = vpop.permute.xlu0 %1488
        %1490 = vrot.lane.b32.xlu0 %v1473, 29
        %v1491 = vpop.permute.xlu0 %1490
        %vm1492 = vcmask 236544
        %v1493 = vsel %vm1492, %v1475, %v1477
        %v1494 = vsel %vm1492, %v1477, %v1479
        %v1495 = vsel %vm1492, %v1479, %v1481
        %v1496 = vsel %vm1492, %v1481, %v1483
        %v1497 = vsel %vm1492, %v1483, %v1485
        %v1498 = vsel %vm1492, %v1485, %v1487
        %v1499 = vsel %vm1492, %v1487, %v1489
        %v1500 = vsel %vm1492, %v1489, %v1491
        %1509 = vst [vmem:[#allocation2 + $0x280] sm:$0xf0] %v1493
        %1510 = vst [vmem:[#allocation2 + $0x288] sm:$0xf0] %v1494
        %1511 = vst [vmem:[#allocation2 + $0x290] sm:$0xf0] %v1495
        %1512 = vst [vmem:[#allocation2 + $0x298] sm:$0xf0] %v1496
        %1513 = vst [vmem:[#allocation2 + $0x2a0] sm:$0xf0] %v1497
        %1514 = vst [vmem:[#allocation2 + $0x2a8] sm:$0xf0] %v1498
        %1515 = vst [vmem:[#allocation2 + $0x2b0] sm:$0xf0] %v1499
        %1516 = vst [vmem:[#allocation2 + $0x2b8] sm:$0xf0] %v1500
        %1517 = vst [vmem:[#allocation1] ss:$2 sm:$0xff] %v177
        %s1518 = scalar_lea.vmem [#allocation1], 16
        %1519 = vst [vmem:[%s1518] ss:$2 sm:$0xff] %v178
        %s1520 = scalar_lea.vmem [#allocation1], 32
        %1521 = vst [vmem:[%s1520] ss:$2 sm:$0xff] %v179
        %s1522 = scalar_lea.vmem [#allocation1], 48
        %1523 = vst [vmem:[%s1522] ss:$2 sm:$0xff] %v180
        %v1524 = vld.sshfl [vmem:[#allocation1 + $0x8] sm:$0xff pattern:$0x75316420]
        %v1525 = vld.sshfl [vmem:[#allocation1 + $0x10] sm:$0xff pattern:$0x75316420]
        %v1526 = vld.sshfl [vmem:[#allocation1 + $0x18] sm:$0xff pattern:$0x75316420]
        %v1527 = vld.sshfl [vmem:[#allocation1 + $0x20] sm:$0xff pattern:$0x75316420]
        %v1528 = vld.sshfl [vmem:[#allocation1 + $0x28] sm:$0xff pattern:$0x75316420]
        %v1529 = vld.sshfl [vmem:[#allocation1 + $0x30] sm:$0xff pattern:$0x75316420]
        %v1530 = vld.sshfl [vmem:[#allocation1 + $0x38] sm:$0xff pattern:$0x75316420]
        %1531 = vst [vmem:[#allocation1] ss:$2 sm:$0xff] %v181
        %v1532 = vld.sshfl [vmem:[#allocation1] sm:$0xff pattern:$0x75316420]
        %v1533 = vld.sshfl [vmem:[#allocation1 + $0x8] sm:$0xff pattern:$0x75316420]
        %1534 = vrot.lane.b32.xlu0 %v1524, 28
        %v1535 = vpop.permute.xlu0 %1534
        %1536 = vrot.lane.b32.xlu0 %v1525, 28
        %v1537 = vpop.permute.xlu0 %1536
        %1538 = vrot.lane.b32.xlu0 %v1526, 28
        %v1539 = vpop.permute.xlu0 %1538
        %1540 = vrot.lane.b32.xlu0 %v1527, 28
        %v1541 = vpop.permute.xlu0 %1540
        %1542 = vrot.lane.b32.xlu0 %v1528, 28
        %v1543 = vpop.permute.xlu0 %1542
        %1544 = vrot.lane.b32.xlu0 %v1529, 28
        %v1545 = vpop.permute.xlu0 %1544
        %1546 = vrot.lane.b32.xlu0 %v1530, 28
        %v1547 = vpop.permute.xlu0 %1546
        %1548 = vrot.lane.b32.xlu0 %v1532, 28
        %v1549 = vpop.permute.xlu0 %1548
        %1550 = vrot.lane.b32.xlu0 %v1533, 28
        %v1551 = vpop.permute.xlu0 %1550
        %vm1552 = vcmask 228352
        %v1553 = vsel %vm1552, %v1535, %v1537
        %v1554 = vsel %vm1552, %v1537, %v1539
        %v1555 = vsel %vm1552, %v1539, %v1541
        %v1556 = vsel %vm1552, %v1541, %v1543
        %v1557 = vsel %vm1552, %v1543, %v1545
        %v1558 = vsel %vm1552, %v1545, %v1547
        %v1559 = vsel %vm1552, %v1547, %v1549
        %v1560 = vsel %vm1552, %v1549, %v1551
        %1569 = vst [vmem:[#allocation2 + $0x2c0] sm:$0xf] %v1553
        %1570 = vst [vmem:[#allocation2 + $0x2c8] sm:$0xf] %v1554
        %1571 = vst [vmem:[#allocation2 + $0x2d0] sm:$0xf] %v1555
        %1572 = vst [vmem:[#allocation2 + $0x2d8] sm:$0xf] %v1556
        %1573 = vst [vmem:[#allocation2 + $0x2e0] sm:$0xf] %v1557
        %1574 = vst [vmem:[#allocation2 + $0x2e8] sm:$0xf] %v1558
        %1575 = vst [vmem:[#allocation2 + $0x2f0] sm:$0xf] %v1559
        %1576 = vst [vmem:[#allocation2 + $0x2f8] sm:$0xf] %v1560
        %s1577 = scalar_lea.vmem [#allocation1], 1
        %1578 = vst [vmem:[%s1577] ss:$2 sm:$0xff] %v177
        %s1579 = scalar_lea.vmem [#allocation1], 17
        %1580 = vst [vmem:[%s1579] ss:$2 sm:$0xff] %v178
        %s1581 = scalar_lea.vmem [#allocation1], 33
        %1582 = vst [vmem:[%s1581] ss:$2 sm:$0xff] %v179
        %s1583 = scalar_lea.vmem [#allocation1], 49
        %1584 = vst [vmem:[%s1583] ss:$2 sm:$0xff] %v180
        %v1585 = vld.sshfl [vmem:[#allocation1 + $0x8] sm:$0xff pattern:$0x75316420]
        %v1586 = vld.sshfl [vmem:[#allocation1 + $0x10] sm:$0xff pattern:$0x75316420]
        %v1587 = vld.sshfl [vmem:[#allocation1 + $0x18] sm:$0xff pattern:$0x75316420]
        %v1588 = vld.sshfl [vmem:[#allocation1 + $0x20] sm:$0xff pattern:$0x75316420]
        %v1589 = vld.sshfl [vmem:[#allocation1 + $0x28] sm:$0xff pattern:$0x75316420]
        %v1590 = vld.sshfl [vmem:[#allocation1 + $0x30] sm:$0xff pattern:$0x75316420]
        %v1591 = vld.sshfl [vmem:[#allocation1 + $0x38] sm:$0xff pattern:$0x75316420]
        %1592 = vst [vmem:[%s1577] ss:$2 sm:$0xff] %v181
        %v1593 = vld.sshfl [vmem:[#allocation1] sm:$0xff pattern:$0x75316420]
        %v1594 = vld.sshfl [vmem:[#allocation1 + $0x8] sm:$0xff pattern:$0x75316420]
        %1595 = vrot.lane.b32.xlu0 %v1585, 27
        %v1596 = vpop.permute.xlu0 %1595
        %1597 = vrot.lane.b32.xlu0 %v1586, 27
        %v1598 = vpop.permute.xlu0 %1597
        %1599 = vrot.lane.b32.xlu0 %v1587, 27
        %v1600 = vpop.permute.xlu0 %1599
        %1601 = vrot.lane.b32.xlu0 %v1588, 27
        %v1602 = vpop.permute.xlu0 %1601
        %1603 = vrot.lane.b32.xlu0 %v1589, 27
        %v1604 = vpop.permute.xlu0 %1603
        %1605 = vrot.lane.b32.xlu0 %v1590, 27
        %v1606 = vpop.permute.xlu0 %1605
        %1607 = vrot.lane.b32.xlu0 %v1591, 27
        %v1608 = vpop.permute.xlu0 %1607
        %1609 = vrot.lane.b32.xlu0 %v1593, 27
        %v1610 = vpop.permute.xlu0 %1609
        %1611 = vrot.lane.b32.xlu0 %v1594, 27
        %v1612 = vpop.permute.xlu0 %1611
        %vm1613 = vcmask 220160
        %v1614 = vsel %vm1613, %v1596, %v1598
        %v1615 = vsel %vm1613, %v1598, %v1600
        %v1616 = vsel %vm1613, %v1600, %v1602
        %v1617 = vsel %vm1613, %v1602, %v1604
        %v1618 = vsel %vm1613, %v1604, %v1606
        %v1619 = vsel %vm1613, %v1606, %v1608
        %v1620 = vsel %vm1613, %v1608, %v1610
        %v1621 = vsel %vm1613, %v1610, %v1612
        %1630 = vst [vmem:[#allocation2 + $0x2c0] sm:$0xf0] %v1614
        %1631 = vst [vmem:[#allocation2 + $0x2c8] sm:$0xf0] %v1615
        %1632 = vst [vmem:[#allocation2 + $0x2d0] sm:$0xf0] %v1616
        %1633 = vst [vmem:[#allocation2 + $0x2d8] sm:$0xf0] %v1617
        %1634 = vst [vmem:[#allocation2 + $0x2e0] sm:$0xf0] %v1618
        %1635 = vst [vmem:[#allocation2 + $0x2e8] sm:$0xf0] %v1619
        %1636 = vst [vmem:[#allocation2 + $0x2f0] sm:$0xf0] %v1620
        %1637 = vst [vmem:[#allocation2 + $0x2f8] sm:$0xf0] %v1621
        %1638 = vst [vmem:[#allocation1] ss:$2 sm:$0xff] %v177
        %s1639 = scalar_lea.vmem [#allocation1], 16
        %1640 = vst [vmem:[%s1639] ss:$2 sm:$0xff] %v178
        %s1641 = scalar_lea.vmem [#allocation1], 32
        %1642 = vst [vmem:[%s1641] ss:$2 sm:$0xff] %v179
        %s1643 = scalar_lea.vmem [#allocation1], 48
        %1644 = vst [vmem:[%s1643] ss:$2 sm:$0xff] %v180
        %v1645 = vld.sshfl [vmem:[#allocation1 + $0x8] sm:$0xff pattern:$0x75316420]
        %v1646 = vld.sshfl [vmem:[#allocation1 + $0x10] sm:$0xff pattern:$0x75316420]
        %v1647 = vld.sshfl [vmem:[#allocation1 + $0x18] sm:$0xff pattern:$0x75316420]
        %v1648 = vld.sshfl [vmem:[#allocation1 + $0x20] sm:$0xff pattern:$0x75316420]
        %v1649 = vld.sshfl [vmem:[#allocation1 + $0x28] sm:$0xff pattern:$0x75316420]
        %v1650 = vld.sshfl [vmem:[#allocation1 + $0x30] sm:$0xff pattern:$0x75316420]
        %v1651 = vld.sshfl [vmem:[#allocation1 + $0x38] sm:$0xff pattern:$0x75316420]
        %1652 = vst [vmem:[#allocation1] ss:$2 sm:$0xff] %v181
        %v1653 = vld.sshfl [vmem:[#allocation1] sm:$0xff pattern:$0x75316420]
        %v1654 = vld.sshfl [vmem:[#allocation1 + $0x8] sm:$0xff pattern:$0x75316420]
        %1655 = vrot.lane.b32.xlu0 %v1645, 19
        %v1656 = vpop.permute.xlu0 %1655
        %1657 = vrot.lane.b32.xlu0 %v1646, 19
        %v1658 = vpop.permute.xlu0 %1657
        %1659 = vrot.lane.b32.xlu0 %v1647, 19
        %v1660 = vpop.permute.xlu0 %1659
        %1661 = vrot.lane.b32.xlu0 %v1648, 19
        %v1662 = vpop.permute.xlu0 %1661
        %1663 = vrot.lane.b32.xlu0 %v1649, 19
        %v1664 = vpop.permute.xlu0 %1663
        %1665 = vrot.lane.b32.xlu0 %v1650, 19
        %v1666 = vpop.permute.xlu0 %1665
        %1667 = vrot.lane.b32.xlu0 %v1651, 19
        %v1668 = vpop.permute.xlu0 %1667
        %1669 = vrot.lane.b32.xlu0 %v1653, 19
        %v1670 = vpop.permute.xlu0 %1669
        %1671 = vrot.lane.b32.xlu0 %v1654, 19
        %v1672 = vpop.permute.xlu0 %1671
        %vm1673 = vcmask 154624
        %v1674 = vsel %vm1673, %v1656, %v1658
        %v1675 = vsel %vm1673, %v1658, %v1660
        %v1676 = vsel %vm1673, %v1660, %v1662
        %v1677 = vsel %vm1673, %v1662, %v1664
        %v1678 = vsel %vm1673, %v1664, %v1666
        %v1679 = vsel %vm1673, %v1666, %v1668
        %v1680 = vsel %vm1673, %v1668, %v1670
        %v1681 = vsel %vm1673, %v1670, %v1672
        %1690 = vst [vmem:[#allocation2 + $0x300] sm:$0xf] %v1674
        %1691 = vst [vmem:[#allocation2 + $0x308] sm:$0xf] %v1675
        %1692 = vst [vmem:[#allocation2 + $0x310] sm:$0xf] %v1676
        %1693 = vst [vmem:[#allocation2 + $0x318] sm:$0xf] %v1677
        %1694 = vst [vmem:[#allocation2 + $0x320] sm:$0xf] %v1678
        %1695 = vst [vmem:[#allocation2 + $0x328] sm:$0xf] %v1679
        %1696 = vst [vmem:[#allocation2 + $0x330] sm:$0xf] %v1680
        %1697 = vst [vmem:[#allocation2 + $0x338] sm:$0xf] %v1681
        %s1698 = scalar_lea.vmem [#allocation1], 1
        %1699 = vst [vmem:[%s1698] ss:$2 sm:$0xff] %v177
        %s1700 = scalar_lea.vmem [#allocation1], 17
        %1701 = vst [vmem:[%s1700] ss:$2 sm:$0xff] %v178
        %s1702 = scalar_lea.vmem [#allocation1], 33
        %1703 = vst [vmem:[%s1702] ss:$2 sm:$0xff] %v179
        %s1704 = scalar_lea.vmem [#allocation1], 49
        %1705 = vst [vmem:[%s1704] ss:$2 sm:$0xff] %v180
        %v1706 = vld.sshfl [vmem:[#allocation1 + $0x8] sm:$0xff pattern:$0x75316420]
        %v1707 = vld.sshfl [vmem:[#allocation1 + $0x10] sm:$0xff pattern:$0x75316420]
        %v1708 = vld.sshfl [vmem:[#allocation1 + $0x18] sm:$0xff pattern:$0x75316420]
        %v1709 = vld.sshfl [vmem:[#allocation1 + $0x20] sm:$0xff pattern:$0x75316420]
        %v1710 = vld.sshfl [vmem:[#allocation1 + $0x28] sm:$0xff pattern:$0x75316420]
        %v1711 = vld.sshfl [vmem:[#allocation1 + $0x30] sm:$0xff pattern:$0x75316420]
        %v1712 = vld.sshfl [vmem:[#allocation1 + $0x38] sm:$0xff pattern:$0x75316420]
        %1713 = vst [vmem:[%s1698] ss:$2 sm:$0xff] %v181
        %v1714 = vld.sshfl [vmem:[#allocation1] sm:$0xff pattern:$0x75316420]
        %v1715 = vld.sshfl [vmem:[#allocation1 + $0x8] sm:$0xff pattern:$0x75316420]
        %1716 = vrot.lane.b32.xlu0 %v1706, 18
        %v1717 = vpop.permute.xlu0 %1716
        %1718 = vrot.lane.b32.xlu0 %v1707, 18
        %v1719 = vpop.permute.xlu0 %1718
        %1720 = vrot.lane.b32.xlu0 %v1708, 18
        %v1721 = vpop.permute.xlu0 %1720
        %1722 = vrot.lane.b32.xlu0 %v1709, 18
        %v1723 = vpop.permute.xlu0 %1722
        %1724 = vrot.lane.b32.xlu0 %v1710, 18
        %v1725 = vpop.permute.xlu0 %1724
        %1726 = vrot.lane.b32.xlu0 %v1711, 18
        %v1727 = vpop.permute.xlu0 %1726
        %1728 = vrot.lane.b32.xlu0 %v1712, 18
        %v1729 = vpop.permute.xlu0 %1728
        %1730 = vrot.lane.b32.xlu0 %v1714, 18
        %v1731 = vpop.permute.xlu0 %1730
        %1732 = vrot.lane.b32.xlu0 %v1715, 18
        %v1733 = vpop.permute.xlu0 %1732
        %vm1734 = vcmask 146432
        %v1735 = vsel %vm1734, %v1717, %v1719
        %v1736 = vsel %vm1734, %v1719, %v1721
        %v1737 = vsel %vm1734, %v1721, %v1723
        %v1738 = vsel %vm1734, %v1723, %v1725
        %v1739 = vsel %vm1734, %v1725, %v1727
        %v1740 = vsel %vm1734, %v1727, %v1729
        %v1741 = vsel %vm1734, %v1729, %v1731
        %v1742 = vsel %vm1734, %v1731, %v1733
        %1751 = vst [vmem:[#allocation2 + $0x300] sm:$0xf0] %v1735
        %1752 = vst [vmem:[#allocation2 + $0x308] sm:$0xf0] %v1736
        %1753 = vst [vmem:[#allocation2 + $0x310] sm:$0xf0] %v1737
        %1754 = vst [vmem:[#allocation2 + $0x318] sm:$0xf0] %v1738
        %1755 = vst [vmem:[#allocation2 + $0x320] sm:$0xf0] %v1739
        %1756 = vst [vmem:[#allocation2 + $0x328] sm:$0xf0] %v1740
        %1757 = vst [vmem:[#allocation2 + $0x330] sm:$0xf0] %v1741
        %1758 = vst [vmem:[#allocation2 + $0x338] sm:$0xf0] %v1742
        %1759 = vst [vmem:[#allocation1] ss:$2 sm:$0xff] %v177
        %s1760 = scalar_lea.vmem [#allocation1], 16
        %1761 = vst [vmem:[%s1760] ss:$2 sm:$0xff] %v178
        %s1762 = scalar_lea.vmem [#allocation1], 32
        %1763 = vst [vmem:[%s1762] ss:$2 sm:$0xff] %v179
        %s1764 = scalar_lea.vmem [#allocation1], 48
        %1765 = vst [vmem:[%s1764] ss:$2 sm:$0xff] %v180
        %v1766 = vld.sshfl [vmem:[#allocation1 + $0x8] sm:$0xff pattern:$0x75316420]
        %v1767 = vld.sshfl [vmem:[#allocation1 + $0x10] sm:$0xff pattern:$0x75316420]
        %v1768 = vld.sshfl [vmem:[#allocation1 + $0x18] sm:$0xff pattern:$0x75316420]
        %v1769 = vld.sshfl [vmem:[#allocation1 + $0x20] sm:$0xff pattern:$0x75316420]
        %v1770 = vld.sshfl [vmem:[#allocation1 + $0x28] sm:$0xff pattern:$0x75316420]
        %v1771 = vld.sshfl [vmem:[#allocation1 + $0x30] sm:$0xff pattern:$0x75316420]
        %v1772 = vld.sshfl [vmem:[#allocation1 + $0x38] sm:$0xff pattern:$0x75316420]
        %1773 = vst [vmem:[#allocation1] ss:$2 sm:$0xff] %v181
        %v1774 = vld.sshfl [vmem:[#allocation1] sm:$0xff pattern:$0x75316420]
        %v1775 = vld.sshfl [vmem:[#allocation1 + $0x8] sm:$0xff pattern:$0x75316420]
        %1776 = vrot.lane.b32.xlu0 %v1766, 17
        %v1777 = vpop.permute.xlu0 %1776
        %1778 = vrot.lane.b32.xlu0 %v1767, 17
        %v1779 = vpop.permute.xlu0 %1778
        %1780 = vrot.lane.b32.xlu0 %v1768, 17
        %v1781 = vpop.permute.xlu0 %1780
        %1782 = vrot.lane.b32.xlu0 %v1769, 17
        %v1783 = vpop.permute.xlu0 %1782
        %1784 = vrot.lane.b32.xlu0 %v1770, 17
        %v1785 = vpop.permute.xlu0 %1784
        %1786 = vrot.lane.b32.xlu0 %v1771, 17
        %v1787 = vpop.permute.xlu0 %1786
        %1788 = vrot.lane.b32.xlu0 %v1772, 17
        %v1789 = vpop.permute.xlu0 %1788
        %1790 = vrot.lane.b32.xlu0 %v1774, 17
        %v1791 = vpop.permute.xlu0 %1790
        %1792 = vrot.lane.b32.xlu0 %v1775, 17
        %v1793 = vpop.permute.xlu0 %1792
        %vm1794 = vcmask 138240
        %v1795 = vsel %vm1794, %v1777, %v1779
        %v1796 = vsel %vm1794, %v1779, %v1781
        %v1797 = vsel %vm1794, %v1781, %v1783
        %v1798 = vsel %vm1794, %v1783, %v1785
        %v1799 = vsel %vm1794, %v1785, %v1787
        %v1800 = vsel %vm1794, %v1787, %v1789
        %v1801 = vsel %vm1794, %v1789, %v1791
        %v1802 = vsel %vm1794, %v1791, %v1793
        %1811 = vst [vmem:[#allocation2 + $0x340] sm:$0xf] %v1795
        %1812 = vst [vmem:[#allocation2 + $0x348] sm:$0xf] %v1796
        %1813 = vst [vmem:[#allocation2 + $0x350] sm:$0xf] %v1797
        %1814 = vst [vmem:[#allocation2 + $0x358] sm:$0xf] %v1798
        %1815 = vst [vmem:[#allocation2 + $0x360] sm:$0xf] %v1799
        %1816 = vst [vmem:[#allocation2 + $0x368] sm:$0xf] %v1800
        %1817 = vst [vmem:[#allocation2 + $0x370] sm:$0xf] %v1801
        %1818 = vst [vmem:[#allocation2 + $0x378] sm:$0xf] %v1802
        %v1819 = vld [vmem:[#allocation6] sm:$0xf]
        %v1820 = vld [vmem:[#allocation2] sm:$0xff]
        %v1821 = vld [vmem:[#allocation2 + $0x8] sm:$0xff]
        %v1822 = vld [vmem:[#allocation2 + $0x10] sm:$0xff]
        %v1823 = vld [vmem:[#allocation2 + $0x18] sm:$0xff]
        %v1824 = vld [vmem:[#allocation2 + $0x20] sm:$0xff]
        %v1825 = vld [vmem:[#allocation2 + $0x28] sm:$0xff]
        %v1826 = vld [vmem:[#allocation2 + $0x30] sm:$0xff]
        %v1827 = vld [vmem:[#allocation2 + $0x38] sm:$0xff]
        %v1828 = vld [vmem:[#allocation2 + $0x40] sm:$0xff]
        %v1829 = vld [vmem:[#allocation2 + $0x48] sm:$0xff]
        %v1830 = vld [vmem:[#allocation2 + $0x50] sm:$0xff]
        %v1831 = vld [vmem:[#allocation2 + $0x58] sm:$0xff]
        %v1832 = vld [vmem:[#allocation2 + $0x60] sm:$0xff]
        %v1833 = vld [vmem:[#allocation2 + $0x68] sm:$0xff]
        %v1834 = vld [vmem:[#allocation2 + $0x70] sm:$0xff]
        %v1835 = vld [vmem:[#allocation2 + $0x78] sm:$0xff]
        %v1836 = vld [vmem:[#allocation2 + $0x80] sm:$0xff]
        %v1837 = vld [vmem:[#allocation2 + $0x88] sm:$0xff]
        %v1838 = vld [vmem:[#allocation2 + $0x90] sm:$0xff]
        %v1839 = vld [vmem:[#allocation2 + $0x98] sm:$0xff]
        %v1840 = vld [vmem:[#allocation2 + $0xa0] sm:$0xff]
        %v1841 = vld [vmem:[#allocation2 + $0xa8] sm:$0xff]
        %v1842 = vld [vmem:[#allocation2 + $0xb0] sm:$0xff]
        %v1843 = vld [vmem:[#allocation2 + $0xb8] sm:$0xff]
        %v1844 = vld [vmem:[#allocation2 + $0xc0] sm:$0xff]
        %v1845 = vld [vmem:[#allocation2 + $0xc8] sm:$0xff]
        %v1846 = vld [vmem:[#allocation2 + $0xd0] sm:$0xff]
        %v1847 = vld [vmem:[#allocation2 + $0xd8] sm:$0xff]
        %v1848 = vld [vmem:[#allocation2 + $0xe0] sm:$0xff]
        %v1849 = vld [vmem:[#allocation2 + $0xe8] sm:$0xff]
        %v1850 = vld [vmem:[#allocation2 + $0xf0] sm:$0xff]
        %v1851 = vld [vmem:[#allocation2 + $0xf8] sm:$0xff]
        %v1852 = vld [vmem:[#allocation2 + $0x100] sm:$0xff]
        %v1853 = vld [vmem:[#allocation2 + $0x108] sm:$0xff]
        %v1854 = vld [vmem:[#allocation2 + $0x110] sm:$0xff]
        %v1855 = vld [vmem:[#allocation2 + $0x118] sm:$0xff]
        %v1856 = vld [vmem:[#allocation2 + $0x120] sm:$0xff]
        %v1857 = vld [vmem:[#allocation2 + $0x128] sm:$0xff]
        %v1858 = vld [vmem:[#allocation2 + $0x130] sm:$0xff]
        %v1859 = vld [vmem:[#allocation2 + $0x138] sm:$0xff]
        %v1860 = vld [vmem:[#allocation2 + $0x140] sm:$0xff]
        %v1861 = vld [vmem:[#allocation2 + $0x148] sm:$0xff]
        %v1862 = vld [vmem:[#allocation2 + $0x150] sm:$0xff]
        %v1863 = vld [vmem:[#allocation2 + $0x158] sm:$0xff]
        %v1864 = vld [vmem:[#allocation2 + $0x160] sm:$0xff]
        %v1865 = vld [vmem:[#allocation2 + $0x168] sm:$0xff]
        %v1866 = vld [vmem:[#allocation2 + $0x170] sm:$0xff]
        %v1867 = vld [vmem:[#allocation2 + $0x178] sm:$0xff]
        %v1868 = vld [vmem:[#allocation2 + $0x180] sm:$0xff]
        %v1869 = vld [vmem:[#allocation2 + $0x188] sm:$0xff]
        %v1870 = vld [vmem:[#allocation2 + $0x190] sm:$0xff]
        %v1871 = vld [vmem:[#allocation2 + $0x198] sm:$0xff]
        %v1872 = vld [vmem:[#allocation2 + $0x1a0] sm:$0xff]
        %v1873 = vld [vmem:[#allocation2 + $0x1a8] sm:$0xff]
        %v1874 = vld [vmem:[#allocation2 + $0x1b0] sm:$0xff]
        %v1875 = vld [vmem:[#allocation2 + $0x1b8] sm:$0xff]
        %v1876 = vld [vmem:[#allocation2 + $0x1c0] sm:$0xff]
        %v1877 = vld [vmem:[#allocation2 + $0x1c8] sm:$0xff]
        %v1878 = vld [vmem:[#allocation2 + $0x1d0] sm:$0xff]
        %v1879 = vld [vmem:[#allocation2 + $0x1d8] sm:$0xff]
        %v1880 = vld [vmem:[#allocation2 + $0x1e0] sm:$0xff]
        %v1881 = vld [vmem:[#allocation2 + $0x1e8] sm:$0xff]
        %v1882 = vld [vmem:[#allocation2 + $0x1f0] sm:$0xff]
        %v1883 = vld [vmem:[#allocation2 + $0x1f8] sm:$0xff]
        %v1884 = vld [vmem:[#allocation2 + $0x200] sm:$0xff]
        %v1885 = vld [vmem:[#allocation2 + $0x208] sm:$0xff]
        %v1886 = vld [vmem:[#allocation2 + $0x210] sm:$0xff]
        %v1887 = vld [vmem:[#allocation2 + $0x218] sm:$0xff]
        %v1888 = vld [vmem:[#allocation2 + $0x220] sm:$0xff]
        %v1889 = vld [vmem:[#allocation2 + $0x228] sm:$0xff]
        %v1890 = vld [vmem:[#allocation2 + $0x230] sm:$0xff]
        %v1891 = vld [vmem:[#allocation2 + $0x238] sm:$0xff]
        %v1892 = vld [vmem:[#allocation2 + $0x240] sm:$0xff]
        %v1893 = vld [vmem:[#allocation2 + $0x248] sm:$0xff]
        %v1894 = vld [vmem:[#allocation2 + $0x250] sm:$0xff]
        %v1895 = vld [vmem:[#allocation2 + $0x258] sm:$0xff]
        %v1896 = vld [vmem:[#allocation2 + $0x260] sm:$0xff]
        %v1897 = vld [vmem:[#allocation2 + $0x268] sm:$0xff]
        %v1898 = vld [vmem:[#allocation2 + $0x270] sm:$0xff]
        %v1899 = vld [vmem:[#allocation2 + $0x278] sm:$0xff]
        %v1900 = vld [vmem:[#allocation2 + $0x280] sm:$0xff]
        %v1901 = vld [vmem:[#allocation2 + $0x288] sm:$0xff]
        %v1902 = vld [vmem:[#allocation2 + $0x290] sm:$0xff]
        %v1903 = vld [vmem:[#allocation2 + $0x298] sm:$0xff]
        %v1904 = vld [vmem:[#allocation2 + $0x2a0] sm:$0xff]
        %v1905 = vld [vmem:[#allocation2 + $0x2a8] sm:$0xff]
        %v1906 = vld [vmem:[#allocation2 + $0x2b0] sm:$0xff]
        %v1907 = vld [vmem:[#allocation2 + $0x2b8] sm:$0xff]
        %v1908 = vld [vmem:[#allocation2 + $0x2c0] sm:$0xff]
        %v1909 = vld [vmem:[#allocation2 + $0x2c8] sm:$0xff]
        %v1910 = vld [vmem:[#allocation2 + $0x2d0] sm:$0xff]
        %v1911 = vld [vmem:[#allocation2 + $0x2d8] sm:$0xff]
        %v1912 = vld [vmem:[#allocation2 + $0x2e0] sm:$0xff]
        %v1913 = vld [vmem:[#allocation2 + $0x2e8] sm:$0xff]
        %v1914 = vld [vmem:[#allocation2 + $0x2f0] sm:$0xff]
        %v1915 = vld [vmem:[#allocation2 + $0x2f8] sm:$0xff]
        %v1916 = vld [vmem:[#allocation2 + $0x300] sm:$0xff]
        %v1917 = vld [vmem:[#allocation2 + $0x308] sm:$0xff]
        %v1918 = vld [vmem:[#allocation2 + $0x310] sm:$0xff]
        %v1919 = vld [vmem:[#allocation2 + $0x318] sm:$0xff]
        %v1920 = vld [vmem:[#allocation2 + $0x320] sm:$0xff]
        %v1921 = vld [vmem:[#allocation2 + $0x328] sm:$0xff]
        %v1922 = vld [vmem:[#allocation2 + $0x330] sm:$0xff]
        %v1923 = vld [vmem:[#allocation2 + $0x338] sm:$0xff]
        %v1924 = vld [vmem:[#allocation2 + $0x340] sm:$0xff]
        %v1925 = vld [vmem:[#allocation2 + $0x348] sm:$0xff]
        %v1926 = vld [vmem:[#allocation2 + $0x350] sm:$0xff]
        %v1927 = vld [vmem:[#allocation2 + $0x358] sm:$0xff]
        %v1928 = vld [vmem:[#allocation2 + $0x360] sm:$0xff]
        %v1929 = vld [vmem:[#allocation2 + $0x368] sm:$0xff]
        %v1930 = vld [vmem:[#allocation2 + $0x370] sm:$0xff]
        %v1931 = vld [vmem:[#allocation2 + $0x378] sm:$0xff]
        %v1932 = vld [vmem:[#allocation2 + $0x380] sm:$0xff]
        %v1933 = vld [vmem:[#allocation2 + $0x388] sm:$0xff]
        %v1934 = vld [vmem:[#allocation2 + $0x390] sm:$0xff]
        %v1935 = vld [vmem:[#allocation2 + $0x398] sm:$0xff]
        %v1936 = vld [vmem:[#allocation2 + $0x3a0] sm:$0xff]
        %v1937 = vld [vmem:[#allocation2 + $0x3a8] sm:$0xff]
        %v1938 = vld [vmem:[#allocation2 + $0x3b0] sm:$0xff]
        %v1939 = vld [vmem:[#allocation2 + $0x3b8] sm:$0xff]
        %v1940 = vld [vmem:[#allocation2 + $0x3c0] sm:$0xff]
        %v1941 = vld [vmem:[#allocation2 + $0x3c8] sm:$0xff]
        %v1942 = vld [vmem:[#allocation2 + $0x3d0] sm:$0xff]
        %v1943 = vld [vmem:[#allocation2 + $0x3d8] sm:$0xff]
        %v1944 = vld [vmem:[#allocation2 + $0x3e0] sm:$0xff]
        %v1945 = vld [vmem:[#allocation2 + $0x3e8] sm:$0xff]
        %v1946 = vld [vmem:[#allocation2 + $0x3f0] sm:$0xff]
        %v1947 = vld [vmem:[#allocation2 + $0x3f8] sm:$0xff]
        %1948 = vmatpush.msra.mxu0 %v1940
        %1949 = vmatpush.msra.mxu0 %v1932
        %1950 = vmatpush.msra.mxu0 %v1924
        %1951 = vmatpush.msra.mxu0 %v1916
        %1952 = vmatpush.msra.mxu0 %v1908
        %1953 = vmatpush.msra.mxu0 %v1900
        %1954 = vmatpush.msra.mxu0 %v1892
        %1955 = vmatpush.msra.mxu0 %v1884
        %1956 = vmatpush.msra.mxu0 %v1876
        %1957 = vmatpush.msra.mxu0 %v1868
        %1958 = vmatpush.msra.mxu0 %v1860
        %1959 = vmatpush.msra.mxu0 %v1852
        %1960 = vmatpush.msra.mxu0 %v1844
        %1961 = vmatpush.msra.mxu0 %v1836
        %1962 = vmatpush.msra.mxu0 %v1828
        %1963 = vmatpush.msra.mxu0 %v1820
        %1964 = vmatmul.f32.gmra.mxu0 %v1819
        %v1965 = vpop.f32.mrf.mxu0
        %v1966 = vadd.f32 0.0, %v1965
        %1967 = vdwg.mxu0
        %1968 = vmatpush.msra.mxu0 %v1941
        %1969 = vmatpush.msra.mxu0 %v1933
        %1970 = vmatpush.msra.mxu0 %v1925
        %1971 = vmatpush.msra.mxu0 %v1917
        %1972 = vmatpush.msra.mxu0 %v1909
        %1973 = vmatpush.msra.mxu0 %v1901
        %1974 = vmatpush.msra.mxu0 %v1893
        %1975 = vmatpush.msra.mxu0 %v1885
        %1976 = vmatpush.msra.mxu0 %v1877
        %1977 = vmatpush.msra.mxu0 %v1869
        %1978 = vmatpush.msra.mxu0 %v1861
        %1979 = vmatpush.msra.mxu0 %v1853
        %1980 = vmatpush.msra.mxu0 %v1845
        %1981 = vmatpush.msra.mxu0 %v1837
        %1982 = vmatpush.msra.mxu0 %v1829
        %1983 = vmatpush.msra.mxu0 %v1821
        %1984 = vmatmul.f32.gmra.mxu0 %v1819
        %v1985 = vpop.f32.mrf.mxu0
        %v1986 = vadd.f32 0.0, %v1985
        %1987 = vdwg.mxu0
        %1988 = vmatpush.msra.mxu0 %v1942
        %1989 = vmatpush.msra.mxu0 %v1934
        %1990 = vmatpush.msra.mxu0 %v1926
        %1991 = vmatpush.msra.mxu0 %v1918
        %1992 = vmatpush.msra.mxu0 %v1910
        %1993 = vmatpush.msra.mxu0 %v1902
        %1994 = vmatpush.msra.mxu0 %v1894
        %1995 = vmatpush.msra.mxu0 %v1886
        %1996 = vmatpush.msra.mxu0 %v1878
        %1997 = vmatpush.msra.mxu0 %v1870
        %1998 = vmatpush.msra.mxu0 %v1862
        %1999 = vmatpush.msra.mxu0 %v1854
        %2000 = vmatpush.msra.mxu0 %v1846
        %2001 = vmatpush.msra.mxu0 %v1838
        %2002 = vmatpush.msra.mxu0 %v1830
        %2003 = vmatpush.msra.mxu0 %v1822
        %2004 = vmatmul.f32.gmra.mxu0 %v1819
        %v2005 = vpop.f32.mrf.mxu0
        %v2006 = vadd.f32 0.0, %v2005
        %2007 = vdwg.mxu0
        %2008 = vmatpush.msra.mxu0 %v1943
        %2009 = vmatpush.msra.mxu0 %v1935
        %2010 = vmatpush.msra.mxu0 %v1927
        %2011 = vmatpush.msra.mxu0 %v1919
        %2012 = vmatpush.msra.mxu0 %v1911
        %2013 = vmatpush.msra.mxu0 %v1903
        %2014 = vmatpush.msra.mxu0 %v1895
        %2015 = vmatpush.msra.mxu0 %v1887
        %2016 = vmatpush.msra.mxu0 %v1879
        %2017 = vmatpush.msra.mxu0 %v1871
        %2018 = vmatpush.msra.mxu0 %v1863
        %2019 = vmatpush.msra.mxu0 %v1855
        %2020 = vmatpush.msra.mxu0 %v1847
        %2021 = vmatpush.msra.mxu0 %v1839
        %2022 = vmatpush.msra.mxu0 %v1831
        %2023 = vmatpush.msra.mxu0 %v1823
        %2024 = vmatmul.f32.gmra.mxu0 %v1819
        %v2025 = vpop.f32.mrf.mxu0
        %v2026 = vadd.f32 0.0, %v2025
        %2027 = vdwg.mxu0
        %2028 = vmatpush.msra.mxu0 %v1944
        %2029 = vmatpush.msra.mxu0 %v1936
        %2030 = vmatpush.msra.mxu0 %v1928
        %2031 = vmatpush.msra.mxu0 %v1920
        %2032 = vmatpush.msra.mxu0 %v1912
        %2033 = vmatpush.msra.mxu0 %v1904
        %2034 = vmatpush.msra.mxu0 %v1896
        %2035 = vmatpush.msra.mxu0 %v1888
        %2036 = vmatpush.msra.mxu0 %v1880
        %2037 = vmatpush.msra.mxu0 %v1872
        %2038 = vmatpush.msra.mxu0 %v1864
        %2039 = vmatpush.msra.mxu0 %v1856
        %2040 = vmatpush.msra.mxu0 %v1848
        %2041 = vmatpush.msra.mxu0 %v1840
        %2042 = vmatpush.msra.mxu0 %v1832
        %2043 = vmatpush.msra.mxu0 %v1824
        %2044 = vmatmul.f32.gmra.mxu0 %v1819
        %v2045 = vpop.f32.mrf.mxu0
        %v2046 = vadd.f32 0.0, %v2045
        %2047 = vdwg.mxu0
        %2048 = vmatpush.msra.mxu0 %v1945
        %2049 = vmatpush.msra.mxu0 %v1937
        %2050 = vmatpush.msra.mxu0 %v1929
        %2051 = vmatpush.msra.mxu0 %v1921
        %2052 = vmatpush.msra.mxu0 %v1913
        %2053 = vmatpush.msra.mxu0 %v1905
        %2054 = vmatpush.msra.mxu0 %v1897
        %2055 = vmatpush.msra.mxu0 %v1889
        %2056 = vmatpush.msra.mxu0 %v1881
        %2057 = vmatpush.msra.mxu0 %v1873
        %2058 = vmatpush.msra.mxu0 %v1865
        %2059 = vmatpush.msra.mxu0 %v1857
        %2060 = vmatpush.msra.mxu0 %v1849
        %2061 = vmatpush.msra.mxu0 %v1841
        %2062 = vmatpush.msra.mxu0 %v1833
        %2063 = vmatpush.msra.mxu0 %v1825
        %2064 = vmatmul.f32.gmra.mxu0 %v1819
        %v2065 = vpop.f32.mrf.mxu0
        %v2066 = vadd.f32 0.0, %v2065
        %2067 = vdwg.mxu0
        %2068 = vmatpush.msra.mxu0 %v1946
        %2069 = vmatpush.msra.mxu0 %v1938
        %2070 = vmatpush.msra.mxu0 %v1930
        %2071 = vmatpush.msra.mxu0 %v1922
        %2072 = vmatpush.msra.mxu0 %v1914
        %2073 = vmatpush.msra.mxu0 %v1906
        %2074 = vmatpush.msra.mxu0 %v1898
        %2075 = vmatpush.msra.mxu0 %v1890
        %2076 = vmatpush.msra.mxu0 %v1882
        %2077 = vmatpush.msra.mxu0 %v1874
        %2078 = vmatpush.msra.mxu0 %v1866
        %2079 = vmatpush.msra.mxu0 %v1858
        %2080 = vmatpush.msra.mxu0 %v1850
        %2081 = vmatpush.msra.mxu0 %v1842
        %2082 = vmatpush.msra.mxu0 %v1834
        %2083 = vmatpush.msra.mxu0 %v1826
        %2084 = vmatmul.f32.gmra.mxu0 %v1819
        %v2085 = vpop.f32.mrf.mxu0
        %v2086 = vadd.f32 0.0, %v2085
        %2087 = vdwg.mxu0
        %2088 = vmatpush.msra.mxu0 %v1947
        %2089 = vmatpush.msra.mxu0 %v1939
        %2090 = vmatpush.msra.mxu0 %v1931
        %2091 = vmatpush.msra.mxu0 %v1923
        %2092 = vmatpush.msra.mxu0 %v1915
        %2093 = vmatpush.msra.mxu0 %v1907
        %2094 = vmatpush.msra.mxu0 %v1899
        %2095 = vmatpush.msra.mxu0 %v1891
        %2096 = vmatpush.msra.mxu0 %v1883
        %2097 = vmatpush.msra.mxu0 %v1875
        %2098 = vmatpush.msra.mxu0 %v1867
        %2099 = vmatpush.msra.mxu0 %v1859
        %2100 = vmatpush.msra.mxu0 %v1851
        %2101 = vmatpush.msra.mxu0 %v1843
        %2102 = vmatpush.msra.mxu0 %v1835
        %2103 = vmatpush.msra.mxu0 %v1827
        %2104 = vmatmul.f32.gmra.mxu0 %v1819
        %v2105 = vpop.f32.mrf.mxu0
        %v2106 = vadd.f32 0.0, %v2105
        %2107 = vdwg.mxu0
        %v2108 = vmax.f32 %v1966, 0.0
        %v2109 = vmax.f32 %v1986, 0.0
        %v2110 = vmax.f32 %v2006, 0.0
        %v2111 = vmax.f32 %v2026, 0.0
        %v2112 = vmax.f32 %v2046, 0.0
        %v2113 = vmax.f32 %v2066, 0.0
        %v2114 = vmax.f32 %v2086, 0.0
        %v2115 = vmax.f32 %v2106, 0.0
        %2116 = vst [vmem:[#allocation1] ss:$2 sm:$0xff] %v177
        %s2117 = scalar_lea.vmem [#allocation1], 16
        %2118 = vst [vmem:[%s2117] ss:$2 sm:$0xff] %v178
        %s2119 = scalar_lea.vmem [#allocation1], 32
        %2120 = vst [vmem:[%s2119] ss:$2 sm:$0xff] %v179
        %s2121 = scalar_lea.vmem [#allocation1], 48
        %2122 = vst [vmem:[%s2121] ss:$2 sm:$0xff] %v180
        %v2123 = vld.sshfl [vmem:[#allocation1 + $0x8] sm:$0xff pattern:$0x75316420]
        %v2124 = vld.sshfl [vmem:[#allocation1 + $0x10] sm:$0xff pattern:$0x75316420]
        %v2125 = vld.sshfl [vmem:[#allocation1 + $0x18] sm:$0xff pattern:$0x75316420]
        %v2126 = vld.sshfl [vmem:[#allocation1 + $0x20] sm:$0xff pattern:$0x75316420]
        %v2127 = vld.sshfl [vmem:[#allocation1 + $0x28] sm:$0xff pattern:$0x75316420]
        %v2128 = vld.sshfl [vmem:[#allocation1 + $0x30] sm:$0xff pattern:$0x75316420]
        %v2129 = vld.sshfl [vmem:[#allocation1 + $0x38] sm:$0xff pattern:$0x75316420]
        %2130 = vst [vmem:[#allocation1] ss:$2 sm:$0xff] %v181
        %v2131 = vld.sshfl [vmem:[#allocation1] sm:$0xff pattern:$0x75316420]
        %v2140 = vadd.f32 %v2108, %v2123
        %v2141 = vadd.f32 %v2109, %v2124
        %v2142 = vadd.f32 %v2110, %v2125
        %v2143 = vadd.f32 %v2111, %v2126
        %v2144 = vadd.f32 %v2112, %v2127
        %v2145 = vadd.f32 %v2113, %v2128
        %v2146 = vadd.f32 %v2114, %v2129
        %v2147 = vadd.f32 %v2115, %v2131
        %v2156 = vrot.slane %v2141, 4
        %v2157 = vrot.slane %v2143, 4
        %v2158 = vrot.slane %v2145, 4
        %v2159 = vrot.slane %v2147, 4
        %vm2160 = vcmask 1043456
        %v2161 = vsel %vm2160, %v2140, %v2156
        %v2162 = vsel %vm2160, %v2142, %v2157
        %v2163 = vsel %vm2160, %v2144, %v2158
        %v2164 = vsel %vm2160, %v2146, %v2159
        %2169 = vst [vmem:[%s176] sm:$0xff] %v2161
        %2170 = vst [vmem:[%s176 + $0x8] sm:$0xff] %v2162
        %2171 = vst [vmem:[%s176 + $0x10] sm:$0xff] %v2163
        %2172 = vst [vmem:[%s176 + $0x18] sm:$0xff] %v2164
        %s2173 = sand.u32 %s75, 1
        %s2174 = scalar_lea.sflag [#allocation5], %s2173
        %s2175 = sand.u32 %s75, 1
        %s2176 = smul.addr %s2175, 32
        %s2177 = scalar_lea.vmem [#allocation8], %s2176
        // Predicated region
        $region37: #{tpu_custom_call.1} parent=27 // pred_check
          %p2178 = pneg %p85
        $region38: #{tpu_custom_call.1} parent=27 // pred_check_branch
          %2180 = sbr.rel (%p2178) target = $region40
        $region39: #{tpu_custom_call.1} parent=27 // pred_region
          %2182 = vsyncadd %s2174, 0
          %s2183 = smul.addr %s20, 8
          %s2184 = smul.addr %s2183, 4
          %s2185 = scalar_lea.hbm %s2, %s2184
          %s2187 = sshll.u32 %s2177, 4
          %s2188 = int_to_ptr.vmem [resolvable:$true] %s2187
          %s2189 = sshll.u32 %s2185, 4
          %s2190 = int_to_ptr.hbm [resolvable:$true] %s2189
          %2192 = dma.vmem_to_hbm [thread:$0]  %s2188, 512, %s2190, %s2174
        $region40: #{tpu_custom_call.1} parent=27 // pred_fallthru
          _
      $region28: #{tpu_custom_call.1} parent=5 // pred_fallthru
        _
      %p2193 = scmp.le.s32.totalorder 2, %s15
      // Predicated region
      $region41: #{tpu_custom_call.1} parent=5 // pred_check
        %p2194 = pneg %p2193
      $region42: #{tpu_custom_call.1} parent=5 // pred_check_branch
        %2196 = sbr.rel (%p2194) target = $region44
      $region43: #{tpu_custom_call.1} parent=5 // pred_region
        %s2197 = ssub.s32 %s15, 2
        // Predicated region
        $region45: #{tpu_custom_call.1} parent=43 // pred_check
          %p2198 = pneg %p91
        $region46: #{tpu_custom_call.1} parent=43 // pred_check_branch
          %2200 = sbr.rel (%p2198) target = $region48
        $region47: #{tpu_custom_call.1} parent=43 // pred_region
          %s2201 = sand.u32 %s76, 1
          %s2202 = scalar_lea.sflag [#allocation5], %s2201
          %s2203 = sand.u32 %s76, 1
          %s2204 = smul.addr %s2203, 32
          %s2205 = scalar_lea.vmem [#allocation8], %s2204
          %2207 = dma.done %s2202, 512
        $region48: #{tpu_custom_call.1} parent=43 // pred_fallthru
          _
      $region44: #{tpu_custom_call.1} parent=5 // pred_fallthru
        _
    $region6: #{tpu_custom_call.1} parent=1 // loop_footer
      %s19 = sadd.s32 1, %s15
    $region7: #{tpu_custom_call.1} parent=1 // loop_footer_branch
      %14 = sbr.rel target = $region3
    $region8: #{tpu_custom_call.1} parent=1 // loop_exit
      _
    %2208 = vsyncpa [#allocation4], 1
    %s2209 = scalar_lea.sflag [#allocation4], 1
    %2210 = vsyncpa %s2209, 1
    %2211 = vsyncpa [#allocation7], 1
    %2212 = vsyncpa [#allocation5], 1
    %s2213 = scalar_lea.sflag [#allocation5], 1
    %2214 = vsyncpa %s2213, 1

</llo_original>
